<compile_context>
chip_gen: v7x
topology: tpu7x:2x2x1
jax: 0.10.0
libtpu: 0.0.40
codegen_flags: <defaults>
</compile_context>

<pallas_src>
import functools

import numpy as np
import jax
import jax.numpy as jnp
from jax import lax
from jax.experimental import pallas as pl
from jax.experimental.pallas import tpu as pltpu


def _gridpe_attn_kernel(x_ref, cos_ref, sin_ref, wq_ref, wk_ref, wv_ref,
                        wp_ref, bp_ref, out_ref, *, scale, num_heads):
    N, C = x_ref.shape
    H = num_heads
    Hh = cos_ref.shape[-1]          # = C // 2 = H * half

    x = x_ref[...]                  # (N, C) bf16

    # ---- fused-head q/k/v projections: lane-dense (N,C)@(C,C), f32 accum ----
    q = jnp.dot(x, wq_ref[...], preferred_element_type=jnp.float32)  # [even|odd] layout
    k = jnp.dot(x, wk_ref[...], preferred_element_type=jnp.float32)  # [even|odd] layout
    v = jnp.dot(x, wv_ref[...], preferred_element_type=jnp.float32)  # natural layout

    # ---- grid-cell rotation, full-width f32 elementwise (slices at C/2) ----
    cos = cos_ref[...].astype(jnp.float32)   # (N, Hh); row 0 == 1
    sin = sin_ref[...].astype(jnp.float32)   # (N, Hh); row 0 == 0
    qe, qo = q[:, :Hh], q[:, Hh:]
    ke, ko = k[:, :Hh], k[:, Hh:]
    qre = qe * cos - qo * sin
    qro = qe * sin + qo * cos
    kre = ke * cos - ko * sin
    kro = ke * sin + ko * cos

    def to_heads(*parts):
        # 2-D (N, H*w) pieces -> (H, N, sum_w); minormost dim preserved.
        cols = [t.reshape(N, H, t.shape[-1] // H) for t in parts]
        t3 = cols[0] if len(cols) == 1 else jnp.concatenate(cols, axis=-1)
        return jnp.transpose(t3, (1, 0, 2))

    # Merged rotated operands: one score dot contracting over the full head dim.
    q3 = to_heads(qre, qro).astype(jnp.bfloat16)   # (H, N, hd)
    k3 = to_heads(kre, kro).astype(jnp.bfloat16)   # (H, N, hd)
    v3 = to_heads(v).astype(jnp.bfloat16)          # (H, N, hd)

    s = lax.dot_general(q3, k3, (((2,), (2,)), ((0,), (0,))),
                        preferred_element_type=jnp.float32) * scale   # (H, N, N)
    s = s - jnp.max(s, axis=-1, keepdims=True)
    p = jnp.exp(s)
    l = jnp.sum(p, axis=-1, keepdims=True)                            # (H, N, 1)

    ctx = lax.dot_general(p.astype(jnp.bfloat16), v3,
                          (((2,), (1,)), ((0,), (0,))),
                          preferred_element_type=jnp.float32)          # (H, N, hd)
    ctx = ctx * pl.reciprocal(l, approx=True)      # deferred softmax normalization

    ctx2 = jnp.transpose(ctx, (1, 0, 2)).reshape(N, C).astype(jnp.bfloat16)
    out = jnp.dot(ctx2, wp_ref[...], preferred_element_type=jnp.float32)  # (N, C)
    out_ref[...] = out + bp_ref[...]


def gridpe_attention(x, positions, params, *, num_heads, dimension=2, base=100.0):
    B, N, C = x.shape
    H = num_heads
    hd = C // H
    n = dimension + 1 if dimension > 1 else 1
    S = hd // (2 * n)
    half = n * S
    Hh = H * half               # == C // 2
    scale = hd ** -0.5

    Wqkv, Wproj, bproj, omegas = (params["Wqkv"], params["Wproj"],
                                  params["bproj"], params["omegas"])

    # ---- grid-cell positional angles (cheap init-style glue, plain JAX) ----
    mag = 1.0 / base ** (2.0 * n * jnp.arange(S, dtype=jnp.float32) / hd)        # (S,)
    theta = jnp.einsum("bsd,hnd->bhsn", positions, omegas)[..., None] * mag       # (B,H,Np,n,S)
    cosv = jnp.cos(theta).reshape(B, H, N - 1, half)
    sinv = jnp.sin(theta).reshape(B, H, N - 1, half)
    # identity rotation for the cls token (row 0)
    cosv = jnp.concatenate([jnp.ones((B, H, 1, half), jnp.float32), cosv], axis=2)
    sinv = jnp.concatenate([jnp.zeros((B, H, 1, half), jnp.float32), sinv], axis=2)
    # fused-head layout (B, N, H*half) with column h*half + pair; bf16 in HBM.
    cosv = jnp.transpose(cosv, (0, 2, 1, 3)).reshape(B, N, Hh).astype(jnp.bfloat16)
    sinv = jnp.transpose(sinv, (0, 2, 1, 3)).reshape(B, N, Hh).astype(jnp.bfloat16)

    # ---- weight plumbing: block-major even/odd column permutation of Wq/Wk ----
    # output column h*half+p <- original column h*hd+2p (even pairs), then odds.
    even_src = np.asarray([h * hd + 2 * p for h in range(H) for p in range(half)])
    perm = np.concatenate([even_src, even_src + 1])
    wq = Wqkv[:, 0 * C:1 * C][:, perm].astype(jnp.bfloat16)   # (C, C) permuted
    wk = Wqkv[:, 1 * C:2 * C][:, perm].astype(jnp.bfloat16)   # (C, C) permuted
    wv = Wqkv[:, 2 * C:3 * C].astype(jnp.bfloat16)            # (C, C) natural
    wp = Wproj.astype(jnp.bfloat16)                           # (C, C)
    bp = bproj.reshape(1, C).astype(jnp.float32)
    xb = x.astype(jnp.bfloat16)

    kernel = functools.partial(_gridpe_attn_kernel, scale=scale, num_heads=H)

    return pl.pallas_call(
        kernel,
        out_shape=jax.ShapeDtypeStruct((B, N, C), jnp.float32),
        grid=(B,),
        in_specs=[
            pl.BlockSpec((None, N, C), lambda b: (b, 0, 0)),     # x (bf16)
            pl.BlockSpec((None, N, Hh), lambda b: (b, 0, 0)),    # cos (bf16)
            pl.BlockSpec((None, N, Hh), lambda b: (b, 0, 0)),    # sin (bf16)
            pl.BlockSpec((C, C), lambda b: (0, 0)),              # Wq  (VMEM-resident)
            pl.BlockSpec((C, C), lambda b: (0, 0)),              # Wk  (VMEM-resident)
            pl.BlockSpec((C, C), lambda b: (0, 0)),              # Wv  (VMEM-resident)
            pl.BlockSpec((C, C), lambda b: (0, 0)),              # Wproj (VMEM-resident)
            pl.BlockSpec((1, C), lambda b: (0, 0)),              # proj bias
        ],
        out_specs=pl.BlockSpec((None, N, C), lambda b: (b, 0, 0)),
        compiler_params=pltpu.CompilerParams(
            dimension_semantics=("parallel",),
            vmem_limit_bytes=48 * 1024 * 1024),
    )(xb, cosv, sinv, wq, wk, wv, wp, bp)


# ---------------- pure-JAX reference (mirrors the PyTorch module) ----------------
def gridpe_attention_ref(x, positions, params, *, num_heads, dimension=2, base=100.0):
    B, N, C = x.shape
    H = num_heads
    hd = C // H
    n = dimension + 1 if dimension > 1 else 1
    S = hd // (2 * n)
    scale = hd ** -0.5
    Wqkv, Wproj, bproj, omegas = (params["Wqkv"], params["Wproj"],
                                  params["bproj"], params["omegas"])

    qkv = (x @ Wqkv).reshape(B, N, 3, H, hd).transpose(2, 0, 3, 1, 4)
    q, k, v = qkv[0], qkv[1], qkv[2]                                   # (B,H,N,hd)

    mag = 1.0 / base ** (2.0 * n * jnp.arange(S, dtype=jnp.float32) / hd)
    theta = jnp.einsum("bsd,hnd->bhsn", positions, omegas)[..., None] * mag   # (B,H,Np,n,S)
    cos_v, sin_v = jnp.cos(theta), jnp.sin(theta)

    def rot(t):
        Bq, Hq, Np, D = t.shape
        tt = t.reshape(Bq, Hq, Np, n, S, 2)
        te, to = tt[..., 0], tt[..., 1]
        re = te * cos_v - to * sin_v
        ro = te * sin_v + to * cos_v
        return jnp.stack([re, ro], axis=-1).reshape(Bq, Hq, Np, D)

    q = q.at[:, :, 1:].set(rot(q[:, :, 1:]))
    k = k.at[:, :, 1:].set(rot(k[:, :, 1:]))
    q = q * scale
    attn = jax.nn.softmax(q @ jnp.swapaxes(k, -1, -2), axis=-1)
    out = jnp.swapaxes(attn @ v, 1, 2).reshape(B, N, C)
    return out @ Wproj + bproj


if __name__ == "__main__":
    B, dimension, H = 2, 2, 2
    n = dimension + 1
    S = 2
    hd = 2 * n * S          # 12 = per-head dim (must be divisible by 2*(dimension+1))
    C = H * hd              # 24
    Np = 8                  # patch tokens
    N = Np + 1              # + cls token

    key = jax.random.PRNGKey(0)
    kx, kp, k1, k2, k3 = jax.random.split(key, 5)
    x = jax.random.normal(kx, (B, N, C), jnp.float32)
    positions = jax.random.normal(kp, (B, Np, dimension), jnp.float32)

    Wqkv = 0.1 * jax.random.normal(k1, (C, 3 * C), jnp.float32)   # qkv_bias=False
    Wproj = 0.1 * jax.random.normal(k2, (C, C), jnp.float32)
    bproj = 0.1 * jax.random.normal(k3, (C,), jnp.float32)

    # deterministic omegas: regular-simplex projection + random rotation (init-time, host-side)
    def simplex_omega(dim, rng):
        if dim == 1:
            return np.array([[1.0]], np.float32)
        pts = np.eye(dim + 1, dtype=np.float32)
        pts -= pts.mean(axis=0)
        U, _, _ = np.linalg.svd(pts.T, full_matrices=False)
        red = U[:, :-1]
        red = red / np.linalg.norm(red, axis=1, keepdims=True)
        Q, _ = np.linalg.qr(rng.standard_normal((dim, dim)).astype(np.float32))
        return (red @ Q.T).astype(np.float32)

    rng = np.random.default_rng(0)
    omegas = jnp.asarray(np.stack([simplex_omega(dimension, rng) for _ in range(H)], axis=0))

    params = dict(Wqkv=Wqkv, Wproj=Wproj, bproj=bproj, omegas=omegas)

    out = gridpe_attention(x, positions, params, num_heads=H, dimension=dimension)
    out = jax.block_until_ready(out)

    ref = gridpe_attention_ref(x, positions, params, num_heads=H, dimension=dimension)
    err = np.max(np.abs(np.asarray(out) - np.asarray(ref)))
    # bf16 MXU operands + approx reciprocal -> loosened tolerance vs f32 reference.
    if not np.allclose(np.asarray(out), np.asarray(ref), atol=3e-2, rtol=3e-2):
        raise AssertionError(f"Pallas kernel mismatch vs reference, max abs err = {err}")

    print("KERNEL_OK")
</pallas_src>

<mosaic_0001>
module attributes {stable_mosaic.version = 11 : i64} {
  func.func @_gridpe_attn_kernel(%arg0: i32, %arg1: memref<1x9x24xbf16, #tpu.memory_space<vmem>>, %arg2: memref<1x9x12xbf16, #tpu.memory_space<vmem>>, %arg3: memref<1x9x12xbf16, #tpu.memory_space<vmem>>, %arg4: memref<24x24xbf16, #tpu.memory_space<vmem>>, %arg5: memref<24x24xbf16, #tpu.memory_space<vmem>>, %arg6: memref<24x24xbf16, #tpu.memory_space<vmem>>, %arg7: memref<24x24xbf16, #tpu.memory_space<vmem>>, %arg8: memref<1x24xf32, #tpu.memory_space<vmem>>, %arg9: memref<1x9x24xf32, #tpu.memory_space<vmem>>) attributes {dimension_semantics = [#tpu.dimension_semantics<parallel>], iteration_bounds = array<i64: 2>, scalar_prefetch = 0 : i64, scratch_operands = 0 : i64, tpu.core_type = #tpu.core_type<tc>, window_params = [{transform_indices = @transform_0, window_bounds = array<i64: 1, 9, 24>}, {transform_indices = @transform_1, window_bounds = array<i64: 1, 9, 12>}, {transform_indices = @transform_2, window_bounds = array<i64: 1, 9, 12>}, {pipeline_mode = #tpu.pipeline_mode<synchronous>, transform_indices = @transform_3, window_bounds = array<i64: 24, 24>}, {pipeline_mode = #tpu.pipeline_mode<synchronous>, transform_indices = @transform_4, window_bounds = array<i64: 24, 24>}, {pipeline_mode = #tpu.pipeline_mode<synchronous>, transform_indices = @transform_5, window_bounds = array<i64: 24, 24>}, {pipeline_mode = #tpu.pipeline_mode<synchronous>, transform_indices = @transform_6, window_bounds = array<i64: 24, 24>}, {pipeline_mode = #tpu.pipeline_mode<synchronous>, transform_indices = @transform_7, window_bounds = array<i64: 1, 24>}, {transform_indices = @transform_8, window_bounds = array<i64: 1, 9, 24>}]} {
    %c0 = arith.constant 0 : index
    %c0_0 = arith.constant 0 : index
    %c0_1 = arith.constant 0 : index
    %0 = vector.load %arg1[%c0, %c0_0, %c0_1] : memref<1x9x24xbf16, #tpu.memory_space<vmem>>, vector<1x9x24xbf16>
    %1 = vector.shape_cast %0 : vector<1x9x24xbf16> to vector<9x24xbf16>
    %c0_2 = arith.constant 0 : index
    %c0_3 = arith.constant 0 : index
    %2 = vector.load %arg4[%c0_2, %c0_3] : memref<24x24xbf16, #tpu.memory_space<vmem>>, vector<24x24xbf16>
    %cst = arith.constant dense<0.000000e+00> : vector<9x24xf32>
    %3 = tpu.matmul %1, %2, %cst {dimension_numbers = #tpu.dot_dimension_numbers<[1], [0], [0], [1], [0, 0, 1, 1], [], []>} : vector<9x24xbf16>, vector<24x24xbf16>, vector<9x24xf32> -> vector<9x24xf32>
    %c0_4 = arith.constant 0 : index
    %c0_5 = arith.constant 0 : index
    %4 = vector.load %arg5[%c0_4, %c0_5] : memref<24x24xbf16, #tpu.memory_space<vmem>>, vector<24x24xbf16>
    %cst_6 = arith.constant dense<0.000000e+00> : vector<9x24xf32>
    %5 = tpu.matmul %1, %4, %cst_6 {dimension_numbers = #tpu.dot_dimension_numbers<[1], [0], [0], [1], [0, 0, 1, 1], [], []>} : vector<9x24xbf16>, vector<24x24xbf16>, vector<9x24xf32> -> vector<9x24xf32>
    %c0_7 = arith.constant 0 : index
    %c0_8 = arith.constant 0 : index
    %6 = vector.load %arg6[%c0_7, %c0_8] : memref<24x24xbf16, #tpu.memory_space<vmem>>, vector<24x24xbf16>
    %cst_9 = arith.constant dense<0.000000e+00> : vector<9x24xf32>
    %7 = tpu.matmul %1, %6, %cst_9 {dimension_numbers = #tpu.dot_dimension_numbers<[1], [0], [0], [1], [0, 0, 1, 1], [], []>} : vector<9x24xbf16>, vector<24x24xbf16>, vector<9x24xf32> -> vector<9x24xf32>
    %c0_10 = arith.constant 0 : index
    %c0_11 = arith.constant 0 : index
    %c0_12 = arith.constant 0 : index
    %8 = vector.load %arg2[%c0_10, %c0_11, %c0_12] : memref<1x9x12xbf16, #tpu.memory_space<vmem>>, vector<1x9x12xbf16>
    %9 = vector.shape_cast %8 : vector<1x9x12xbf16> to vector<9x12xbf16>
    %10 = arith.extf %9 : vector<9x12xbf16> to vector<9x12xf32>
    %c0_13 = arith.constant 0 : index
    %c0_14 = arith.constant 0 : index
    %c0_15 = arith.constant 0 : index
    %11 = vector.load %arg3[%c0_13, %c0_14, %c0_15] : memref<1x9x12xbf16, #tpu.memory_space<vmem>>, vector<1x9x12xbf16>
    %12 = vector.shape_cast %11 : vector<1x9x12xbf16> to vector<9x12xbf16>
    %13 = arith.extf %12 : vector<9x12xbf16> to vector<9x12xf32>
    %14 = vector.extract_strided_slice %3 {offsets = [0, 0], sizes = [9, 12], strides = [1, 1]} : vector<9x24xf32> to vector<9x12xf32>
    %15 = vector.extract_strided_slice %3 {offsets = [0, 12], sizes = [9, 12], strides = [1, 1]} : vector<9x24xf32> to vector<9x12xf32>
    %16 = vector.extract_strided_slice %5 {offsets = [0, 0], sizes = [9, 12], strides = [1, 1]} : vector<9x24xf32> to vector<9x12xf32>
    %17 = vector.extract_strided_slice %5 {offsets = [0, 12], sizes = [9, 12], strides = [1, 1]} : vector<9x24xf32> to vector<9x12xf32>
    %18 = arith.mulf %14, %10 : vector<9x12xf32>
    %19 = arith.mulf %15, %13 : vector<9x12xf32>
    %20 = arith.subf %18, %19 : vector<9x12xf32>
    %21 = arith.mulf %14, %13 : vector<9x12xf32>
    %22 = arith.mulf %15, %10 : vector<9x12xf32>
    %23 = arith.addf %21, %22 : vector<9x12xf32>
    %24 = arith.mulf %16, %10 : vector<9x12xf32>
    %25 = arith.mulf %17, %13 : vector<9x12xf32>
    %26 = arith.subf %24, %25 : vector<9x12xf32>
    %27 = arith.mulf %16, %13 : vector<9x12xf32>
    %28 = arith.mulf %17, %10 : vector<9x12xf32>
    %29 = arith.addf %27, %28 : vector<9x12xf32>
    %30 = vector.shape_cast %20 : vector<9x12xf32> to vector<9x2x6xf32>
    %31 = vector.shape_cast %23 : vector<9x12xf32> to vector<9x2x6xf32>
    %32 = tpu.concatenate %30, %31 in 2 : vector<9x2x6xf32>, vector<9x2x6xf32> -> vector<9x2x12xf32>
    %33 = tpu.transpose %32, [1, 0, 2] : vector<9x2x12xf32> -> vector<2x9x12xf32>
    %34 = arith.truncf %33 : vector<2x9x12xf32> to vector<2x9x12xbf16>
    %35 = vector.shape_cast %26 : vector<9x12xf32> to vector<9x2x6xf32>
    %36 = vector.shape_cast %29 : vector<9x12xf32> to vector<9x2x6xf32>
    %37 = tpu.concatenate %35, %36 in 2 : vector<9x2x6xf32>, vector<9x2x6xf32> -> vector<9x2x12xf32>
    %38 = tpu.transpose %37, [1, 0, 2] : vector<9x2x12xf32> -> vector<2x9x12xf32>
    %39 = arith.truncf %38 : vector<2x9x12xf32> to vector<2x9x12xbf16>
    %40 = vector.shape_cast %7 : vector<9x24xf32> to vector<9x2x12xf32>
    %41 = tpu.transpose %40, [1, 0, 2] : vector<9x2x12xf32> -> vector<2x9x12xf32>
    %42 = arith.truncf %41 : vector<2x9x12xf32> to vector<2x9x12xbf16>
    %cst_16 = arith.constant dense<0.000000e+00> : vector<2x9x9xf32>
    %43 = tpu.matmul %34, %39, %cst_16 {dimension_numbers = #tpu.dot_dimension_numbers<[2], [2], [1], [1], [0, 0, 0, 1, 1, 1], [0], [0]>} : vector<2x9x12xbf16>, vector<2x9x12xbf16>, vector<2x9x9xf32> -> vector<2x9x9xf32>
    %cst_17 = arith.constant 0.288675129 : f32
    %44 = vector.broadcast %cst_17 : f32 to vector<2x9x9xf32>
    %45 = arith.mulf %43, %44 : vector<2x9x9xf32>
    %cst_18 = arith.constant dense<0xFF800000> : vector<2x9xf32>
    %46 = vector.multi_reduction <maximumf>, %45, %cst_18 [2] : vector<2x9x9xf32> to vector<2x9xf32>
    %47 = vector.shape_cast %46 : vector<2x9xf32> to vector<2x9x1xf32>
    %48 = vector.broadcast %47 : vector<2x9x1xf32> to vector<2x9x9xf32>
    %49 = arith.subf %45, %48 : vector<2x9x9xf32>
    %50 = math.exp %49 : vector<2x9x9xf32>
    %cst_19 = arith.constant dense<0.000000e+00> : vector<2x9xf32>
    %51 = vector.multi_reduction <add>, %50, %cst_19 [2] : vector<2x9x9xf32> to vector<2x9xf32>
    %52 = vector.shape_cast %51 : vector<2x9xf32> to vector<2x9x1xf32>
    %53 = arith.truncf %50 : vector<2x9x9xf32> to vector<2x9x9xbf16>
    %cst_20 = arith.constant dense<0.000000e+00> : vector<2x9x12xf32>
    %54 = tpu.matmul %53, %42, %cst_20 {dimension_numbers = #tpu.dot_dimension_numbers<[2], [1], [1], [2], [0, 0, 0, 1, 1, 2], [0], [0]>} : vector<2x9x9xbf16>, vector<2x9x12xbf16>, vector<2x9x12xf32> -> vector<2x9x12xf32>
    %55 = tpu.reciprocal %52 {approx = true} : vector<2x9x1xf32> -> vector<2x9x1xf32>
    %56 = vector.broadcast %55 : vector<2x9x1xf32> to vector<2x9x12xf32>
    %57 = arith.mulf %54, %56 : vector<2x9x12xf32>
    %58 = tpu.transpose %57, [1, 0, 2] : vector<2x9x12xf32> -> vector<9x2x12xf32>
    %59 = vector.shape_cast %58 : vector<9x2x12xf32> to vector<9x24xf32>
    %60 = arith.truncf %59 : vector<9x24xf32> to vector<9x24xbf16>
    %c0_21 = arith.constant 0 : index
    %c0_22 = arith.constant 0 : index
    %61 = vector.load %arg7[%c0_21, %c0_22] : memref<24x24xbf16, #tpu.memory_space<vmem>>, vector<24x24xbf16>
    %cst_23 = arith.constant dense<0.000000e+00> : vector<9x24xf32>
    %62 = tpu.matmul %60, %61, %cst_23 {dimension_numbers = #tpu.dot_dimension_numbers<[1], [0], [0], [1], [0, 0, 1, 1], [], []>} : vector<9x24xbf16>, vector<24x24xbf16>, vector<9x24xf32> -> vector<9x24xf32>
    %c0_24 = arith.constant 0 : index
    %c0_25 = arith.constant 0 : index
    %63 = vector.load %arg8[%c0_24, %c0_25] : memref<1x24xf32, #tpu.memory_space<vmem>>, vector<1x24xf32>
    %64 = vector.broadcast %63 : vector<1x24xf32> to vector<9x24xf32>
    %65 = arith.addf %62, %64 : vector<9x24xf32>
    %c0_26 = arith.constant 0 : index
    %c0_27 = arith.constant 0 : index
    %c0_28 = arith.constant 0 : index
    %66 = vector.load %arg9[%c0_26, %c0_27, %c0_28] : memref<1x9x24xf32, #tpu.memory_space<vmem>>, vector<1x9x24xf32>
    %67 = vector.shape_cast %66 : vector<1x9x24xf32> to vector<9x24xf32>
    %68 = vector.shape_cast %65 : vector<9x24xf32> to vector<1x9x24xf32>
    tpu.vector_store %arg9[%c0_26, %c0_27, %c0_28], %68 {strides = array<i32>} : memref<1x9x24xf32, #tpu.memory_space<vmem>>, vector<1x9x24xf32>,
    return
  }
  func.func @transform_0(%arg0: i32) -> (i32, i32, i32) {
    %c0_i32 = arith.constant 0 : i32
    %c0_i32_0 = arith.constant 0 : i32
    %c0_i32_1 = arith.constant 0 : i32
    return %arg0, %c0_i32, %c0_i32_0 : i32, i32, i32
  }
  func.func @transform_1(%arg0: i32) -> (i32, i32, i32) {
    %c0_i32 = arith.constant 0 : i32
    %c0_i32_0 = arith.constant 0 : i32
    %c0_i32_1 = arith.constant 0 : i32
    return %arg0, %c0_i32, %c0_i32_0 : i32, i32, i32
  }
  func.func @transform_2(%arg0: i32) -> (i32, i32, i32) {
    %c0_i32 = arith.constant 0 : i32
    %c0_i32_0 = arith.constant 0 : i32
    %c0_i32_1 = arith.constant 0 : i32
    return %arg0, %c0_i32, %c0_i32_0 : i32, i32, i32
  }
  func.func @transform_3(%arg0: i32) -> (i32, i32) {
    %c0_i32 = arith.constant 0 : i32
    %c0_i32_0 = arith.constant 0 : i32
    %c0_i32_1 = arith.constant 0 : i32
    return %c0_i32, %c0_i32_0 : i32, i32
  }
  func.func @transform_4(%arg0: i32) -> (i32, i32) {
    %c0_i32 = arith.constant 0 : i32
    %c0_i32_0 = arith.constant 0 : i32
    %c0_i32_1 = arith.constant 0 : i32
    return %c0_i32, %c0_i32_0 : i32, i32
  }
  func.func @transform_5(%arg0: i32) -> (i32, i32) {
    %c0_i32 = arith.constant 0 : i32
    %c0_i32_0 = arith.constant 0 : i32
    %c0_i32_1 = arith.constant 0 : i32
    return %c0_i32, %c0_i32_0 : i32, i32
  }
  func.func @transform_6(%arg0: i32) -> (i32, i32) {
    %c0_i32 = arith.constant 0 : i32
    %c0_i32_0 = arith.constant 0 : i32
    %c0_i32_1 = arith.constant 0 : i32
    return %c0_i32, %c0_i32_0 : i32, i32
  }
  func.func @transform_7(%arg0: i32) -> (i32, i32) {
    %c0_i32 = arith.constant 0 : i32
    %c0_i32_0 = arith.constant 0 : i32
    %c0_i32_1 = arith.constant 0 : i32
    return %c0_i32, %c0_i32_0 : i32, i32
  }
  func.func @transform_8(%arg0: i32) -> (i32, i32, i32) {
    %c0_i32 = arith.constant 0 : i32
    %c0_i32_0 = arith.constant 0 : i32
    %c0_i32_1 = arith.constant 0 : i32
    return %arg0, %c0_i32, %c0_i32_0 : i32, i32, i32
  }
}

</mosaic_0001>

<llo_original>
// kernel: tpu_custom_call.1
$region0: #{tpu_custom_call.1}
  #allocation0 [shape = 'u32[]', space=smem, size = 0x4, offset = 0x4, fixed_abs, tag = 'smem constant byte address 0x4 - core index']
  #allocation1 [shape = 'u32[144,128]{1,0:T(1,128)}', space=vmem, size = 0x12000, scoped, tag = 'internal scratch']
  %s0 = inlined_call_operand.vmem [shape: bf16[2,9,24], index: 0, kind: input, shape index: {}]
  %s1 = inlined_call_operand.vmem [shape: bf16[2,9,12], index: 1, kind: input, shape index: {}]
  %s2 = inlined_call_operand.vmem [shape: bf16[2,9,12], index: 2, kind: input, shape index: {}]
  %s3 = inlined_call_operand.vmem [shape: bf16[24,24], index: 3, kind: input, shape index: {}]
  %s4 = inlined_call_operand.vmem [shape: bf16[24,24], index: 4, kind: input, shape index: {}]
  %s5 = inlined_call_operand.vmem [shape: bf16[24,24], index: 5, kind: input, shape index: {}]
  %s6 = inlined_call_operand.vmem [shape: bf16[24,24], index: 6, kind: input, shape index: {}]
  %s7 = inlined_call_operand.vmem [shape: f32[1,24], index: 7, kind: input, shape index: {}]
  %s8 = inlined_call_operand.vmem [shape: f32[2,9,24], index: 8, kind: output, shape index: {}]
  %s9 = sld [smem:[#allocation0]]
  $region65: #{tpu_custom_call.1} parent=0
    _
  %s11 = ssub.s32 1, %s9
  %s12 = scalar_select 0, %s11, %s9
  loop: start=0, step=1, limit=4
  $region2: #{tpu_custom_call.1} parent=0 // loop_pre_header
    _
  $region3: #{tpu_custom_call.1} parent=0 // loop_header
    %s14 = sphi 0, %s18
    %p15 = scmp.ge.s32.totalorder %s14, 4
    %s24 = sphi 0, %s26
    %s27 = sphi 0, %s24
    %s28 = sphi 0, %s27
    %s44 = sphi 0, %s28
    %s50 = sphi 0, %s52
    %s53 = sphi 0, %s50
    %s54 = sphi 0, %s53
    %s70 = sphi 0, %s54
    %s76 = sphi 0, %s78
    %s79 = sphi 0, %s76
    %s80 = sphi 0, %s79
    %s96 = sphi 0, %s80
    %s100 = sphi 0, %s100
    %s102 = sphi 0, %s100
    %s103 = sphi 0, %s102
    %s117 = sphi 0, %s103
    %s121 = sphi 0, %s121
    %s123 = sphi 0, %s121
    %s124 = sphi 0, %s123
    %s138 = sphi 0, %s124
    %s142 = sphi 0, %s142
    %s144 = sphi 0, %s142
    %s145 = sphi 0, %s144
    %s159 = sphi 0, %s145
    %s163 = sphi 0, %s163
    %s165 = sphi 0, %s163
    %s166 = sphi 0, %s165
    %s180 = sphi 0, %s166
    %s184 = sphi 0, %s184
    %s186 = sphi 0, %s184
    %s187 = sphi 0, %s186
    %s201 = sphi 0, %s187
    %s207 = sphi 0, %s209
    %s210 = sphi 0, %s207
    %s211 = sphi 0, %s210
    %s227 = sphi 0, %s211
  $region4: #{tpu_custom_call.1} parent=0 // loop_header_branch
    %17 = sbr.rel (%p15) target = $region8
  $region5: #{tpu_custom_call.1} parent=0 // loop_body
    %s19 = ssub.s32 %s14, 1
    %s20 = ssub.s32 %s14, 2
    %s21 = sadd.s32 %s14, 1
    %s22 = ssub.s32 %s14, %s21
    %p23 = scmp.eq.s32.totalorder %s22, 0
    %s25 = sadd.s32 %s24, 1
    %s26 = scalar_select %p23, %s24, %s25
    %p29 = pneg %p23
    %p30 = scmp.eq.s32.totalorder %s14, 1
    %p31 = por %p29, %p30
    %p32 = scmp.ne.s32.totalorder %s24, %s27
    %p33 = scmp.eq.s32.totalorder %s14, 0
    %p34 = por %p32, %p33
    %p35 = scmp.ne.s32.totalorder %s24, %s27
    %p36 = scmp.eq.s32.totalorder %s19, 1
    %p37 = por %p35, %p36
    %p38 = scmp.ne.s32.totalorder %s27, %s28
    %p39 = scmp.eq.s32.totalorder %s19, 0
    %p40 = por %p38, %p39
    %p41 = scmp.ne.s32.totalorder %s27, %s28
    %p42 = scmp.eq.s32.totalorder %s20, 1
    %p43 = por %p41, %p42
    %p45 = scmp.ne.s32.totalorder %s28, %s44
    %p46 = scmp.eq.s32.totalorder %s20, 0
    %p47 = por %p45, %p46
    %s48 = ssub.s32 %s14, %s21
    %p49 = scmp.eq.s32.totalorder %s48, 0
    %s51 = sadd.s32 %s50, 1
    %s52 = scalar_select %p49, %s50, %s51
    %p55 = pneg %p49
    %p56 = scmp.eq.s32.totalorder %s14, 1
    %p57 = por %p55, %p56
    %p58 = scmp.ne.s32.totalorder %s50, %s53
    %p59 = scmp.eq.s32.totalorder %s14, 0
    %p60 = por %p58, %p59
    %p61 = scmp.ne.s32.totalorder %s50, %s53
    %p62 = scmp.eq.s32.totalorder %s19, 1
    %p63 = por %p61, %p62
    %p64 = scmp.ne.s32.totalorder %s53, %s54
    %p65 = scmp.eq.s32.totalorder %s19, 0
    %p66 = por %p64, %p65
    %p67 = scmp.ne.s32.totalorder %s53, %s54
    %p68 = scmp.eq.s32.totalorder %s20, 1
    %p69 = por %p67, %p68
    %p71 = scmp.ne.s32.totalorder %s54, %s70
    %p72 = scmp.eq.s32.totalorder %s20, 0
    %p73 = por %p71, %p72
    %s74 = ssub.s32 %s14, %s21
    %p75 = scmp.eq.s32.totalorder %s74, 0
    %s77 = sadd.s32 %s76, 1
    %s78 = scalar_select %p75, %s76, %s77
    %p81 = pneg %p75
    %p82 = scmp.eq.s32.totalorder %s14, 1
    %p83 = por %p81, %p82
    %p84 = scmp.ne.s32.totalorder %s76, %s79
    %p85 = scmp.eq.s32.totalorder %s14, 0
    %p86 = por %p84, %p85
    %p87 = scmp.ne.s32.totalorder %s76, %s79
    %p88 = scmp.eq.s32.totalorder %s19, 1
    %p89 = por %p87, %p88
    %p90 = scmp.ne.s32.totalorder %s79, %s80
    %p91 = scmp.eq.s32.totalorder %s19, 0
    %p92 = por %p90, %p91
    %p93 = scmp.ne.s32.totalorder %s79, %s80
    %p94 = scmp.eq.s32.totalorder %s20, 1
    %p95 = por %p93, %p94
    %p97 = scmp.ne.s32.totalorder %s80, %s96
    %p98 = scmp.eq.s32.totalorder %s20, 0
    %p99 = por %p97, %p98
    %s101 = sadd.s32 %s100, 1
    %p104 = scmp.eq.s32.totalorder %s14, 1
    %p105 = scmp.ne.s32.totalorder %s100, %s102
    %p106 = scmp.eq.s32.totalorder %s14, 0
    %p107 = por %p105, %p106
    %p108 = scmp.ne.s32.totalorder %s100, %s102
    %p109 = scmp.eq.s32.totalorder %s19, 1
    %p110 = por %p108, %p109
    %p111 = scmp.ne.s32.totalorder %s102, %s103
    %p112 = scmp.eq.s32.totalorder %s19, 0
    %p113 = por %p111, %p112
    %p114 = scmp.ne.s32.totalorder %s102, %s103
    %p115 = scmp.eq.s32.totalorder %s20, 1
    %p116 = por %p114, %p115
    %p118 = scmp.ne.s32.totalorder %s103, %s117
    %p119 = scmp.eq.s32.totalorder %s20, 0
    %p120 = por %p118, %p119
    %s122 = sadd.s32 %s121, 1
    %p125 = scmp.eq.s32.totalorder %s14, 1
    %p126 = scmp.ne.s32.totalorder %s121, %s123
    %p127 = scmp.eq.s32.totalorder %s14, 0
    %p128 = por %p126, %p127
    %p129 = scmp.ne.s32.totalorder %s121, %s123
    %p130 = scmp.eq.s32.totalorder %s19, 1
    %p131 = por %p129, %p130
    %p132 = scmp.ne.s32.totalorder %s123, %s124
    %p133 = scmp.eq.s32.totalorder %s19, 0
    %p134 = por %p132, %p133
    %p135 = scmp.ne.s32.totalorder %s123, %s124
    %p136 = scmp.eq.s32.totalorder %s20, 1
    %p137 = por %p135, %p136
    %p139 = scmp.ne.s32.totalorder %s124, %s138
    %p140 = scmp.eq.s32.totalorder %s20, 0
    %p141 = por %p139, %p140
    %s143 = sadd.s32 %s142, 1
    %p146 = scmp.eq.s32.totalorder %s14, 1
    %p147 = scmp.ne.s32.totalorder %s142, %s144
    %p148 = scmp.eq.s32.totalorder %s14, 0
    %p149 = por %p147, %p148
    %p150 = scmp.ne.s32.totalorder %s142, %s144
    %p151 = scmp.eq.s32.totalorder %s19, 1
    %p152 = por %p150, %p151
    %p153 = scmp.ne.s32.totalorder %s144, %s145
    %p154 = scmp.eq.s32.totalorder %s19, 0
    %p155 = por %p153, %p154
    %p156 = scmp.ne.s32.totalorder %s144, %s145
    %p157 = scmp.eq.s32.totalorder %s20, 1
    %p158 = por %p156, %p157
    %p160 = scmp.ne.s32.totalorder %s145, %s159
    %p161 = scmp.eq.s32.totalorder %s20, 0
    %p162 = por %p160, %p161
    %s164 = sadd.s32 %s163, 1
    %p167 = scmp.eq.s32.totalorder %s14, 1
    %p168 = scmp.ne.s32.totalorder %s163, %s165
    %p169 = scmp.eq.s32.totalorder %s14, 0
    %p170 = por %p168, %p169
    %p171 = scmp.ne.s32.totalorder %s163, %s165
    %p172 = scmp.eq.s32.totalorder %s19, 1
    %p173 = por %p171, %p172
    %p174 = scmp.ne.s32.totalorder %s165, %s166
    %p175 = scmp.eq.s32.totalorder %s19, 0
    %p176 = por %p174, %p175
    %p177 = scmp.ne.s32.totalorder %s165, %s166
    %p178 = scmp.eq.s32.totalorder %s20, 1
    %p179 = por %p177, %p178
    %p181 = scmp.ne.s32.totalorder %s166, %s180
    %p182 = scmp.eq.s32.totalorder %s20, 0
    %p183 = por %p181, %p182
    %s185 = sadd.s32 %s184, 1
    %p188 = scmp.eq.s32.totalorder %s14, 1
    %p189 = scmp.ne.s32.totalorder %s184, %s186
    %p190 = scmp.eq.s32.totalorder %s14, 0
    %p191 = por %p189, %p190
    %p192 = scmp.ne.s32.totalorder %s184, %s186
    %p193 = scmp.eq.s32.totalorder %s19, 1
    %p194 = por %p192, %p193
    %p195 = scmp.ne.s32.totalorder %s186, %s187
    %p196 = scmp.eq.s32.totalorder %s19, 0
    %p197 = por %p195, %p196
    %p198 = scmp.ne.s32.totalorder %s186, %s187
    %p199 = scmp.eq.s32.totalorder %s20, 1
    %p200 = por %p198, %p199
    %p202 = scmp.ne.s32.totalorder %s187, %s201
    %p203 = scmp.eq.s32.totalorder %s20, 0
    %p204 = por %p202, %p203
    %s205 = ssub.s32 %s14, %s21
    %p206 = scmp.eq.s32.totalorder %s205, 0
    %s208 = sadd.s32 %s207, 1
    %s209 = scalar_select %p206, %s207, %s208
    %p212 = pneg %p206
    %p213 = scmp.eq.s32.totalorder %s14, 1
    %p214 = por %p212, %p213
    %p215 = scmp.ne.s32.totalorder %s207, %s210
    %p216 = scmp.eq.s32.totalorder %s14, 0
    %p217 = por %p215, %p216
    %p218 = scmp.ne.s32.totalorder %s207, %s210
    %p219 = scmp.eq.s32.totalorder %s19, 1
    %p220 = por %p218, %p219
    %p221 = scmp.ne.s32.totalorder %s210, %s211
    %p222 = scmp.eq.s32.totalorder %s19, 0
    %p223 = por %p221, %p222
    %p224 = scmp.ne.s32.totalorder %s210, %s211
    %p225 = scmp.eq.s32.totalorder %s20, 1
    %p226 = por %p224, %p225
    %p228 = scmp.ne.s32.totalorder %s211, %s227
    %p229 = scmp.eq.s32.totalorder %s20, 0
    %p230 = por %p228, %p229
    %p231 = scmp.le.s32.totalorder 1, %s14
    %p232 = scmp.lt.s32.totalorder %s14, 3
    %p233 = pnand %p231, %p232
    %p234 = pneg %p233
    // Predicated region
    $region9: #{tpu_custom_call.1} parent=5 // pred_check
      _
    $region10: #{tpu_custom_call.1} parent=5 // pred_check_branch
      %236 = sbr.rel (%p233) target = $region12
    $region11: #{tpu_custom_call.1} parent=5 // pred_region
      %s237 = ssub.s32 %s14, 1
      // Predicated region
      $region13: #{tpu_custom_call.1} parent=11 // pred_check
        %p238 = pneg %p113
      $region14: #{tpu_custom_call.1} parent=11 // pred_check_branch
        %240 = sbr.rel (%p238) target = $region16
      $region15: #{tpu_custom_call.1} parent=11 // pred_region
        _
      $region16: #{tpu_custom_call.1} parent=11 // pred_fallthru
        _
      // Predicated region
      $region17: #{tpu_custom_call.1} parent=11 // pred_check
        %p241 = pneg %p134
      $region18: #{tpu_custom_call.1} parent=11 // pred_check_branch
        %243 = sbr.rel (%p241) target = $region20
      $region19: #{tpu_custom_call.1} parent=11 // pred_region
        _
      $region20: #{tpu_custom_call.1} parent=11 // pred_fallthru
        _
      // Predicated region
      $region21: #{tpu_custom_call.1} parent=11 // pred_check
        %p244 = pneg %p155
      $region22: #{tpu_custom_call.1} parent=11 // pred_check_branch
        %246 = sbr.rel (%p244) target = $region24
      $region23: #{tpu_custom_call.1} parent=11 // pred_region
        _
      $region24: #{tpu_custom_call.1} parent=11 // pred_fallthru
        _
      // Predicated region
      $region25: #{tpu_custom_call.1} parent=11 // pred_check
        %p247 = pneg %p176
      $region26: #{tpu_custom_call.1} parent=11 // pred_check_branch
        %249 = sbr.rel (%p247) target = $region28
      $region27: #{tpu_custom_call.1} parent=11 // pred_region
        _
      $region28: #{tpu_custom_call.1} parent=11 // pred_fallthru
        _
      // Predicated region
      $region29: #{tpu_custom_call.1} parent=11 // pred_check
        %p250 = pneg %p197
      $region30: #{tpu_custom_call.1} parent=11 // pred_check_branch
        %252 = sbr.rel (%p250) target = $region32
      $region31: #{tpu_custom_call.1} parent=11 // pred_region
        _
      $region32: #{tpu_custom_call.1} parent=11 // pred_fallthru
        _
    $region12: #{tpu_custom_call.1} parent=5 // pred_fallthru
      _
    %p253 = scmp.lt.s32.totalorder %s14, 2
    // Predicated region
    $region33: #{tpu_custom_call.1} parent=5 // pred_check
      %p254 = pneg %p253
    $region34: #{tpu_custom_call.1} parent=5 // pred_check_branch
      %256 = sbr.rel (%p254) target = $region36
    $region35: #{tpu_custom_call.1} parent=5 // pred_region
      // Predicated region
      $region37: #{tpu_custom_call.1} parent=35 // pred_check
        %p257 = pneg %p34
      $region38: #{tpu_custom_call.1} parent=35 // pred_check_branch
        %259 = sbr.rel (%p257) target = $region40
      $region39: #{tpu_custom_call.1} parent=35 // pred_region
        %p260 = scmp.lt.s32.totalorder %s14, 1
        %s261 = scalar_select %p260, %s14, 1
        %s262 = smul.addr %s261, 2
        %s263 = smul.addr %s262, 4
        %s264 = scalar_lea.vmem %s0, %s263
      $region40: #{tpu_custom_call.1} parent=35 // pred_fallthru
        _
      // Predicated region
      $region41: #{tpu_custom_call.1} parent=35 // pred_check
        %p265 = pneg %p60
      $region42: #{tpu_custom_call.1} parent=35 // pred_check_branch
        %267 = sbr.rel (%p265) target = $region44
      $region43: #{tpu_custom_call.1} parent=35 // pred_region
        %p268 = scmp.lt.s32.totalorder %s14, 1
        %s269 = scalar_select %p268, %s14, 1
        %s270 = smul.addr %s269, 2
        %s271 = smul.addr %s270, 4
        %s272 = scalar_lea.vmem %s1, %s271
      $region44: #{tpu_custom_call.1} parent=35 // pred_fallthru
        _
      // Predicated region
      $region45: #{tpu_custom_call.1} parent=35 // pred_check
        %p273 = pneg %p86
      $region46: #{tpu_custom_call.1} parent=35 // pred_check_branch
        %275 = sbr.rel (%p273) target = $region48
      $region47: #{tpu_custom_call.1} parent=35 // pred_region
        %p276 = scmp.lt.s32.totalorder %s14, 1
        %s277 = scalar_select %p276, %s14, 1
        %s278 = smul.addr %s277, 2
        %s279 = smul.addr %s278, 4
        %s280 = scalar_lea.vmem %s2, %s279
      $region48: #{tpu_custom_call.1} parent=35 // pred_fallthru
        _
    $region36: #{tpu_custom_call.1} parent=5 // pred_fallthru
      _
    %p281 = scmp.le.s32.totalorder 1, %s14
    %p282 = scmp.lt.s32.totalorder %s14, 3
    %p283 = pnand %p281, %p282
    %p284 = pneg %p283
    // Predicated region
    $region49: #{tpu_custom_call.1} parent=5 // pred_check
      _
    $region50: #{tpu_custom_call.1} parent=5 // pred_check_branch
      %286 = sbr.rel (%p283) target = $region52
    $region51: #{tpu_custom_call.1} parent=5 // pred_region
      %s287 = ssub.s32 %s14, 1
      %p288 = scmp.lt.s32.totalorder %s19, 1
      %s289 = scalar_select %p288, %s19, 1
      %s290 = smul.addr %s289, 2
      %s291 = smul.addr %s290, 4
      %s292 = scalar_lea.vmem %s0, %s291
      %p293 = pneg %p40
      %p294 = pneg %p37
      %p295 = scmp.lt.s32.totalorder %s19, 1
      %s296 = scalar_select %p295, %s19, 1
      %s297 = smul.addr %s296, 2
      %s298 = smul.addr %s297, 4
      %s299 = scalar_lea.vmem %s1, %s298
      %p300 = pneg %p66
      %p301 = pneg %p63
      %p302 = scmp.lt.s32.totalorder %s19, 1
      %s303 = scalar_select %p302, %s19, 1
      %s304 = smul.addr %s303, 2
      %s305 = smul.addr %s304, 4
      %s306 = scalar_lea.vmem %s2, %s305
      %p307 = pneg %p92
      %p308 = pneg %p89
      %p309 = pneg %p113
      %p310 = pneg %p110
      %p311 = pneg %p134
      %p312 = pneg %p131
      %p313 = pneg %p155
      %p314 = pneg %p152
      %p315 = pneg %p176
      %p316 = pneg %p173
      %p317 = pneg %p197
      %p318 = pneg %p194
      %p319 = pneg %p223
      %p320 = pneg %p220
      %p321 = scmp.lt.s32.totalorder %s19, 1
      %s322 = scalar_select %p321, %s19, 1
      %s323 = smul.addr %s322, 2
      %s324 = smul.addr %s323, 8
      %s325 = scalar_lea.vmem %s8, %s324
      %p326 = scmp.lt.s32.totalorder %s19, 1
      %s327 = scalar_select %p326, %s19, 1
      %s328 = smul.addr %s327, 2
      %s329 = smul.addr %s328, 4
      %s330 = scalar_lea.vmem %s0, %s329
      %p331 = scmp.lt.s32.totalorder %s19, 1
      %s332 = scalar_select %p331, %s19, 1
      %s333 = smul.addr %s332, 2
      %s334 = smul.addr %s333, 4
      %s335 = scalar_lea.vmem %s1, %s334
      %p336 = scmp.lt.s32.totalorder %s19, 1
      %s337 = scalar_select %p336, %s19, 1
      %s338 = smul.addr %s337, 2
      %s339 = smul.addr %s338, 4
      %s340 = scalar_lea.vmem %s2, %s339
      %p341 = scmp.lt.s32.totalorder %s19, 1
      %s342 = scalar_select %p341, %s19, 1
      %s343 = smul.addr %s342, 2
      %s344 = smul.addr %s343, 8
      %s345 = scalar_lea.vmem %s8, %s344
      %v347 = vld [vmem:[%s330] sm:$0xf]
      %v348 = vld [vmem:[%s330 + $0x4] sm:$0x1]
      %v349 = vld [vmem:[%s3] sm:$0xf]
      %v350 = vld [vmem:[%s3 + $0x4] sm:$0xf]
      %v351 = vld [vmem:[%s3 + $0x8] sm:$0xf]
      %v354 = vunpack.c.l.b16 %v347
      %v355 = vunpack.c.l.b16 %v348
      %v356 = vpack.c.b16 %v355, %v354
      %v360 = vunpack.c.l.b16 %v349
      %v361 = vunpack.c.l.b16 %v350
      %v362 = vunpack.c.l.b16 %v351
      %v363 = vpack.c.b16 %v361, %v360
      %v364 = vpack.c.b16 %v362, %v362
      %vm366 = vcmask 195584
      %v368 = vsel %vm366, %v356, 0
      %vm370 = vcmask 1043456
      %v372 = vsel %vm370, %v364, 0
      %374 = vmatprep.subr.bf16.mxu0 0
      %375 = vmatpush1.bf16.msra.mxu0 %v363
      %376 = vmatprep.subr.bf16.mxu0 0
      %377 = vmatpush1.bf16.msra.mxu0 %v372
      %378 = vmatprep.subr.bf16.mxu0 0
      %379 = vmatpush1.bf16.msra.mxu0 0
      %380 = vmatprep.subr.bf16.mxu0 0
      %381 = vmatpush1.bf16.msra.mxu0 0
      %382 = vmatprep.subr.bf16.mxu0 0
      %383 = vmatpush1.bf16.msra.mxu0 0
      %384 = vmatprep.subr.bf16.mxu0 0
      %385 = vmatpush1.bf16.msra.mxu0 0
      %386 = vmatprep.subr.bf16.mxu0 0
      %387 = vmatpush1.bf16.msra.mxu0 0
      %388 = vmatprep.subr.bf16.mxu0 0
      %389 = vmatpush1.bf16.msra.mxu0 0
      %390 = vmatprep.subr.bf16.mxu0 0
      %391 = vmatpush1.bf16.msra.mxu0 0
      %392 = vmatprep.subr.bf16.mxu0 0
      %393 = vmatpush1.bf16.msra.mxu0 0
      %394 = vmatprep.subr.bf16.mxu0 0
      %395 = vmatpush1.bf16.msra.mxu0 0
      %396 = vmatprep.subr.bf16.mxu0 0
      %397 = vmatpush1.bf16.msra.mxu0 0
      %398 = vmatprep.subr.bf16.mxu0 0
      %399 = vmatpush1.bf16.msra.mxu0 0
      %400 = vmatprep.subr.bf16.mxu0 0
      %401 = vmatpush1.bf16.msra.mxu0 0
      %402 = vmatprep.subr.bf16.mxu0 0
      %403 = vmatpush1.bf16.msra.mxu0 0
      %404 = vmatprep.subr.bf16.mxu0 0
      %405 = vmatpush1.bf16.msra.mxu0 0
      %406 = vmatprep.mubr.bf16.mxu0 0
      %407 = vmatmul.mubr.bf16.gmra.mrb[0].mxu0 %v368
      %v408 = vpop.f32.mrb[0].mxu0
      %v409 = vadd.f32 0.0, %v408
      %v410 = vpop.f32.mrb[0].mxu0
      %v411 = vpop.f32.mrb[0].mxu0
      %v412 = vadd.f32 0.0, %v411
      %v413 = vpop.f32.mrb[0].mxu0
      %414 = vdwg.mxu0
      %v415 = vld [vmem:[%s4] sm:$0xf]
      %v416 = vld [vmem:[%s4 + $0x4] sm:$0xf]
      %v417 = vld [vmem:[%s4 + $0x8] sm:$0xf]
      %v421 = vunpack.c.l.b16 %v415
      %v422 = vunpack.c.l.b16 %v416
      %v423 = vunpack.c.l.b16 %v417
      %v424 = vpack.c.b16 %v422, %v421
      %v425 = vpack.c.b16 %v423, %v423
      %v428 = vsel %vm370, %v425, 0
      %430 = vmatprep.subr.bf16.mxu0 0
      %431 = vmatpush1.bf16.msra.mxu0 %v424
      %432 = vmatprep.subr.bf16.mxu0 0
      %433 = vmatpush1.bf16.msra.mxu0 %v428
      %434 = vmatprep.subr.bf16.mxu0 0
      %435 = vmatpush1.bf16.msra.mxu0 0
      %436 = vmatprep.subr.bf16.mxu0 0
      %437 = vmatpush1.bf16.msra.mxu0 0
      %438 = vmatprep.subr.bf16.mxu0 0
      %439 = vmatpush1.bf16.msra.mxu0 0
      %440 = vmatprep.subr.bf16.mxu0 0
      %441 = vmatpush1.bf16.msra.mxu0 0
      %442 = vmatprep.subr.bf16.mxu0 0
      %443 = vmatpush1.bf16.msra.mxu0 0
      %444 = vmatprep.subr.bf16.mxu0 0
      %445 = vmatpush1.bf16.msra.mxu0 0
      %446 = vmatprep.subr.bf16.mxu0 0
      %447 = vmatpush1.bf16.msra.mxu0 0
      %448 = vmatprep.subr.bf16.mxu0 0
      %449 = vmatpush1.bf16.msra.mxu0 0
      %450 = vmatprep.subr.bf16.mxu0 0
      %451 = vmatpush1.bf16.msra.mxu0 0
      %452 = vmatprep.subr.bf16.mxu0 0
      %453 = vmatpush1.bf16.msra.mxu0 0
      %454 = vmatprep.subr.bf16.mxu0 0
      %455 = vmatpush1.bf16.msra.mxu0 0
      %456 = vmatprep.subr.bf16.mxu0 0
      %457 = vmatpush1.bf16.msra.mxu0 0
      %458 = vmatprep.subr.bf16.mxu0 0
      %459 = vmatpush1.bf16.msra.mxu0 0
      %460 = vmatprep.subr.bf16.mxu0 0
      %461 = vmatpush1.bf16.msra.mxu0 0
      %462 = vmatprep.mubr.bf16.mxu0 0
      %463 = vmatmul.mubr.bf16.gmra.mrb[0].mxu0 %v368
      %v464 = vpop.f32.mrb[0].mxu0
      %v465 = vadd.f32 0.0, %v464
      %v466 = vpop.f32.mrb[0].mxu0
      %v467 = vpop.f32.mrb[0].mxu0
      %v468 = vadd.f32 0.0, %v467
      %v469 = vpop.f32.mrb[0].mxu0
      %470 = vdwg.mxu0
      %v471 = vld [vmem:[%s5] sm:$0xf]
      %v472 = vld [vmem:[%s5 + $0x4] sm:$0xf]
      %v473 = vld [vmem:[%s5 + $0x8] sm:$0xf]
      %v477 = vunpack.c.l.b16 %v471
      %v478 = vunpack.c.l.b16 %v472
      %v479 = vunpack.c.l.b16 %v473
      %v480 = vpack.c.b16 %v478, %v477
      %v481 = vpack.c.b16 %v479, %v479
      %v484 = vsel %vm370, %v481, 0
      %486 = vmatprep.subr.bf16.mxu0 0
      %487 = vmatpush1.bf16.msra.mxu0 %v480
      %488 = vmatprep.subr.bf16.mxu0 0
      %489 = vmatpush1.bf16.msra.mxu0 %v484
      %490 = vmatprep.subr.bf16.mxu0 0
      %491 = vmatpush1.bf16.msra.mxu0 0
      %492 = vmatprep.subr.bf16.mxu0 0
      %493 = vmatpush1.bf16.msra.mxu0 0
      %494 = vmatprep.subr.bf16.mxu0 0
      %495 = vmatpush1.bf16.msra.mxu0 0
      %496 = vmatprep.subr.bf16.mxu0 0
      %497 = vmatpush1.bf16.msra.mxu0 0
      %498 = vmatprep.subr.bf16.mxu0 0
      %499 = vmatpush1.bf16.msra.mxu0 0
      %500 = vmatprep.subr.bf16.mxu0 0
      %501 = vmatpush1.bf16.msra.mxu0 0
      %502 = vmatprep.subr.bf16.mxu0 0
      %503 = vmatpush1.bf16.msra.mxu0 0
      %504 = vmatprep.subr.bf16.mxu0 0
      %505 = vmatpush1.bf16.msra.mxu0 0
      %506 = vmatprep.subr.bf16.mxu0 0
      %507 = vmatpush1.bf16.msra.mxu0 0
      %508 = vmatprep.subr.bf16.mxu0 0
      %509 = vmatpush1.bf16.msra.mxu0 0
      %510 = vmatprep.subr.bf16.mxu0 0
      %511 = vmatpush1.bf16.msra.mxu0 0
      %512 = vmatprep.subr.bf16.mxu0 0
      %513 = vmatpush1.bf16.msra.mxu0 0
      %514 = vmatprep.subr.bf16.mxu0 0
      %515 = vmatpush1.bf16.msra.mxu0 0
      %516 = vmatprep.subr.bf16.mxu0 0
      %517 = vmatpush1.bf16.msra.mxu0 0
      %518 = vmatprep.mubr.bf16.mxu0 0
      %519 = vmatmul.mubr.bf16.gmra.mrb[0].mxu0 %v368
      %v520 = vpop.f32.mrb[0].mxu0
      %v521 = vadd.f32 0.0, %v520
      %v522 = vpop.f32.mrb[0].mxu0
      %v523 = vpop.f32.mrb[0].mxu0
      %v524 = vadd.f32 0.0, %v523
      %v525 = vpop.f32.mrb[0].mxu0
      %526 = vdwg.mxu0
      %v527 = vld [vmem:[%s335] sm:$0xf]
      %v528 = vld [vmem:[%s335 + $0x4] sm:$0x1]
      %v529 = vunpack.c.l.bf16 %v527
      %v530 = vunpack.c.l.bf16 %v528
      %v531 = vld [vmem:[%s340] sm:$0xf]
      %v532 = vld [vmem:[%s340 + $0x4] sm:$0x1]
      %v533 = vunpack.c.l.bf16 %v531
      %v534 = vunpack.c.l.bf16 %v532
      %v535 = vmul.f32 %v409, %v529
      %v536 = vmul.f32 %v412, %v530
      %539 = vrot.lane.b32.xlu0 %v533, 12
      %v540 = vpop.permute.xlu0 %539
      %541 = vrot.lane.b32.xlu0 %v534, 12
      %v542 = vpop.permute.xlu0 %541
      %v545 = vmul.f32 %v409, %v540
      %v546 = vmul.f32 %v412, %v542
      %549 = vrot.lane.b32.xlu0 %v545, 116
      %v550 = vpop.permute.xlu0 %549
      %551 = vrot.lane.b32.xlu0 %v546, 116
      %v552 = vpop.permute.xlu0 %551
      %v555 = vsub.f32 %v535, %v550
      %v556 = vsub.f32 %v536, %v552
      %v557 = vmul.f32 %v409, %v533
      %v558 = vmul.f32 %v412, %v534
      %561 = vrot.lane.b32.xlu0 %v529, 12
      %v562 = vpop.permute.xlu0 %561
      %563 = vrot.lane.b32.xlu0 %v530, 12
      %v564 = vpop.permute.xlu0 %563
      %v567 = vmul.f32 %v409, %v562
      %v568 = vmul.f32 %v412, %v564
      %571 = vrot.lane.b32.xlu0 %v567, 116
      %v572 = vpop.permute.xlu0 %571
      %573 = vrot.lane.b32.xlu0 %v568, 116
      %v574 = vpop.permute.xlu0 %573
      %v577 = vadd.f32 %v557, %v572
      %v578 = vadd.f32 %v558, %v574
      %v579 = vmul.f32 %v465, %v529
      %v580 = vmul.f32 %v468, %v530
      %v581 = vmul.f32 %v465, %v540
      %v582 = vmul.f32 %v468, %v542
      %585 = vrot.lane.b32.xlu0 %v581, 116
      %v586 = vpop.permute.xlu0 %585
      %587 = vrot.lane.b32.xlu0 %v582, 116
      %v588 = vpop.permute.xlu0 %587
      %v591 = vsub.f32 %v579, %v586
      %v592 = vsub.f32 %v580, %v588
      %v593 = vmul.f32 %v465, %v533
      %v594 = vmul.f32 %v468, %v534
      %v595 = vmul.f32 %v465, %v562
      %v596 = vmul.f32 %v468, %v564
      %599 = vrot.lane.b32.xlu0 %v595, 116
      %v600 = vpop.permute.xlu0 %599
      %601 = vrot.lane.b32.xlu0 %v596, 116
      %v602 = vpop.permute.xlu0 %601
      %v605 = vadd.f32 %v593, %v600
      %v606 = vadd.f32 %v594, %v602
      %609 = vrot.lane.b32.xlu0 %v555, 122
      %v610 = vpop.permute.xlu0 %609
      %611 = vrot.lane.b32.xlu0 %v556, 122
      %v612 = vpop.permute.xlu0 %611
      %v614 = vcombine.high %v555, 0.0
      %v616 = vunpack.c.l.s4 1983009808
      %v617 = vunpack.c.0.s8 %v616
      %v618 = vlaneseq
      %v619 = vshrl.u32 %v618, 7
      %v620 = vsub.s32 %v617, %v619
      %v621 = vrot.slane %v555, %v620
      %v623 = vunpack.c.l.s4 1983009808
      %v624 = vunpack.c.0.s8 %v623
      %v625 = vlaneseq
      %v626 = vshrl.u32 %v625, 7
      %v627 = vsub.s32 %v624, %v626
      %v628 = vrot.slane %v614, %v627
      %v629 = vcombine.high %v610, 0.0
      %v631 = vunpack.c.l.s4 1983009808
      %v632 = vunpack.c.0.s8 %v631
      %v633 = vlaneseq
      %v634 = vshrl.u32 %v633, 7
      %v635 = vsub.s32 %v632, %v634
      %v636 = vrot.slane %v610, %v635
      %v638 = vunpack.c.l.s4 1983009808
      %v639 = vunpack.c.0.s8 %v638
      %v640 = vlaneseq
      %v641 = vshrl.u32 %v640, 7
      %v642 = vsub.s32 %v639, %v641
      %v643 = vrot.slane %v629, %v642
      %v644 = vcombine.low %v621, %v636
      %v645 = vcombine.high %v621, %v636
      %v647 = vunpack.c.l.s4 1934713408
      %v648 = vunpack.c.0.s8 %v647
      %v649 = vlaneseq
      %v650 = vshrl.u32 %v649, 7
      %v651 = vsub.s32 %v648, %v650
      %v652 = vrot.slane %v644, %v651
      %v654 = vunpack.c.l.s4 1934713408
      %v655 = vunpack.c.0.s8 %v654
      %v656 = vlaneseq
      %v657 = vshrl.u32 %v656, 7
      %v658 = vsub.s32 %v655, %v657
      %v659 = vrot.slane %v645, %v658
      %v660 = vcombine.low %v628, %v643
      %v661 = vcombine.high %v628, %v643
      %v663 = vunpack.c.l.s4 1934713408
      %v664 = vunpack.c.0.s8 %v663
      %v665 = vlaneseq
      %v666 = vshrl.u32 %v665, 7
      %v667 = vsub.s32 %v664, %v666
      %v668 = vrot.slane %v660, %v667
      %v670 = vunpack.c.l.s4 1934713408
      %v671 = vunpack.c.0.s8 %v670
      %v672 = vlaneseq
      %v673 = vshrl.u32 %v672, 7
      %v674 = vsub.s32 %v671, %v673
      %v675 = vrot.slane %v661, %v674
      %v676 = vcombine.high %v652, 0.0
      %v677 = vcombine.high %v659, 0.0
      %v678 = vcombine.high %v668, 0.0
      %v679 = vcombine.high %v675, 0.0
      %v681 = vcombine.low %v556, %v612
      %v683 = vunpack.c.l.s4 1934713408
      %v684 = vunpack.c.0.s8 %v683
      %v685 = vlaneseq
      %v686 = vshrl.u32 %v685, 7
      %v687 = vsub.s32 %v684, %v686
      %v688 = vrot.slane %v681, %v687
      %691 = vrot.lane.b32.xlu0 %v577, 122
      %v692 = vpop.permute.xlu0 %691
      %693 = vrot.lane.b32.xlu0 %v578, 122
      %v694 = vpop.permute.xlu0 %693
      %v696 = vcombine.high %v577, 0.0
      %v698 = vunpack.c.l.s4 1983009808
      %v699 = vunpack.c.0.s8 %v698
      %v700 = vlaneseq
      %v701 = vshrl.u32 %v700, 7
      %v702 = vsub.s32 %v699, %v701
      %v703 = vrot.slane %v577, %v702
      %v705 = vunpack.c.l.s4 1983009808
      %v706 = vunpack.c.0.s8 %v705
      %v707 = vlaneseq
      %v708 = vshrl.u32 %v707, 7
      %v709 = vsub.s32 %v706, %v708
      %v710 = vrot.slane %v696, %v709
      %v711 = vcombine.high %v692, 0.0
      %v713 = vunpack.c.l.s4 1983009808
      %v714 = vunpack.c.0.s8 %v713
      %v715 = vlaneseq
      %v716 = vshrl.u32 %v715, 7
      %v717 = vsub.s32 %v714, %v716
      %v718 = vrot.slane %v692, %v717
      %v720 = vunpack.c.l.s4 1983009808
      %v721 = vunpack.c.0.s8 %v720
      %v722 = vlaneseq
      %v723 = vshrl.u32 %v722, 7
      %v724 = vsub.s32 %v721, %v723
      %v725 = vrot.slane %v711, %v724
      %v726 = vcombine.low %v703, %v718
      %v727 = vcombine.high %v703, %v718
      %v729 = vunpack.c.l.s4 1934713408
      %v730 = vunpack.c.0.s8 %v729
      %v731 = vlaneseq
      %v732 = vshrl.u32 %v731, 7
      %v733 = vsub.s32 %v730, %v732
      %v734 = vrot.slane %v726, %v733
      %v736 = vunpack.c.l.s4 1934713408
      %v737 = vunpack.c.0.s8 %v736
      %v738 = vlaneseq
      %v739 = vshrl.u32 %v738, 7
      %v740 = vsub.s32 %v737, %v739
      %v741 = vrot.slane %v727, %v740
      %v742 = vcombine.low %v710, %v725
      %v743 = vcombine.high %v710, %v725
      %v745 = vunpack.c.l.s4 1934713408
      %v746 = vunpack.c.0.s8 %v745
      %v747 = vlaneseq
      %v748 = vshrl.u32 %v747, 7
      %v749 = vsub.s32 %v746, %v748
      %v750 = vrot.slane %v742, %v749
      %v752 = vunpack.c.l.s4 1934713408
      %v753 = vunpack.c.0.s8 %v752
      %v754 = vlaneseq
      %v755 = vshrl.u32 %v754, 7
      %v756 = vsub.s32 %v753, %v755
      %v757 = vrot.slane %v743, %v756
      %v758 = vcombine.high %v734, 0.0
      %v759 = vcombine.high %v741, 0.0
      %v760 = vcombine.high %v750, 0.0
      %v761 = vcombine.high %v757, 0.0
      %v763 = vcombine.low %v578, %v694
      %v765 = vunpack.c.l.s4 1934713408
      %v766 = vunpack.c.0.s8 %v765
      %v767 = vlaneseq
      %v768 = vshrl.u32 %v767, 7
      %v769 = vsub.s32 %v766, %v768
      %v770 = vrot.slane %v763, %v769
      %780 = vrot.lane.b32.xlu0 %v734, 6
      %v781 = vpop.permute.xlu0 %780
      %782 = vrot.lane.b32.xlu0 %v758, 6
      %v783 = vpop.permute.xlu0 %782
      %784 = vrot.lane.b32.xlu0 %v741, 6
      %v785 = vpop.permute.xlu0 %784
      %786 = vrot.lane.b32.xlu0 %v759, 6
      %v787 = vpop.permute.xlu0 %786
      %788 = vrot.lane.b32.xlu0 %v750, 6
      %v789 = vpop.permute.xlu0 %788
      %790 = vrot.lane.b32.xlu0 %v760, 6
      %v791 = vpop.permute.xlu0 %790
      %792 = vrot.lane.b32.xlu0 %v757, 6
      %v793 = vpop.permute.xlu0 %792
      %794 = vrot.lane.b32.xlu0 %v761, 6
      %v795 = vpop.permute.xlu0 %794
      %796 = vrot.lane.b32.xlu0 %v770, 6
      %v797 = vpop.permute.xlu0 %796
      %vm807 = vcmask 48128
      %v808 = vsel %vm807, %v652, %v781
      %v809 = vsel %vm807, %v676, %v783
      %v810 = vsel %vm807, %v659, %v785
      %v811 = vsel %vm807, %v677, %v787
      %v812 = vsel %vm807, %v668, %v789
      %v813 = vsel %vm807, %v678, %v791
      %v814 = vsel %vm807, %v675, %v793
      %v815 = vsel %vm807, %v679, %v795
      %v816 = vcombine.low %v808, %v810
      %v818 = vunpack.c.l.s4 1983009808
      %v819 = vunpack.c.0.s8 %v818
      %v820 = vlaneseq
      %v821 = vshrl.u32 %v820, 7
      %v822 = vsub.s32 %v819, %v821
      %v823 = vrot.slane %v816, %v822
      %v824 = vcombine.low %v809, %v811
      %v826 = vunpack.c.l.s4 1983009808
      %v827 = vunpack.c.0.s8 %v826
      %v828 = vlaneseq
      %v829 = vshrl.u32 %v828, 7
      %v830 = vsub.s32 %v827, %v829
      %v831 = vrot.slane %v824, %v830
      %v832 = vcombine.low %v812, %v814
      %v834 = vunpack.c.l.s4 1983009808
      %v835 = vunpack.c.0.s8 %v834
      %v836 = vlaneseq
      %v837 = vshrl.u32 %v836, 7
      %v838 = vsub.s32 %v835, %v837
      %v839 = vrot.slane %v832, %v838
      %v840 = vcombine.low %v813, %v815
      %v842 = vunpack.c.l.s4 1983009808
      %v843 = vunpack.c.0.s8 %v842
      %v844 = vlaneseq
      %v845 = vshrl.u32 %v844, 7
      %v846 = vsub.s32 %v843, %v845
      %v847 = vrot.slane %v840, %v846
      %v848 = vcombine.low %v823, %v831
      %v850 = vunpack.c.l.s4 1934713408
      %v851 = vunpack.c.0.s8 %v850
      %v852 = vlaneseq
      %v853 = vshrl.u32 %v852, 7
      %v854 = vsub.s32 %v851, %v853
      %v855 = vrot.slane %v848, %v854
      %v856 = vcombine.low %v839, %v847
      %v858 = vunpack.c.l.s4 1934713408
      %v859 = vunpack.c.0.s8 %v858
      %v860 = vlaneseq
      %v861 = vshrl.u32 %v860, 7
      %v862 = vsub.s32 %v859, %v861
      %v863 = vrot.slane %v856, %v862
      %v864 = vcombine.low %v855, %v863
      %v865 = vcombine.high %v855, %v863
      %v866 = vsel %vm807, %v688, %v797
      %v868 = vunpack.c.l.s4 1934713408
      %v869 = vunpack.c.0.s8 %v868
      %v870 = vlaneseq
      %v871 = vshrl.u32 %v870, 7
      %v872 = vsub.s32 %v869, %v871
      %v873 = vrot.slane %v866, %v872
      %v874 = vcombine.high %v873, 0.0
      %v875 = vpack.c.bf16 %v873, %v864
      %v876 = vpack.c.bf16 %v874, %v865
      %879 = vrot.lane.b32.xlu0 %v591, 122
      %v880 = vpop.permute.xlu0 %879
      %881 = vrot.lane.b32.xlu0 %v592, 122
      %v882 = vpop.permute.xlu0 %881
      %v884 = vcombine.high %v591, 0.0
      %v886 = vunpack.c.l.s4 1983009808
      %v887 = vunpack.c.0.s8 %v886
      %v888 = vlaneseq
      %v889 = vshrl.u32 %v888, 7
      %v890 = vsub.s32 %v887, %v889
      %v891 = vrot.slane %v591, %v890
      %v893 = vunpack.c.l.s4 1983009808
      %v894 = vunpack.c.0.s8 %v893
      %v895 = vlaneseq
      %v896 = vshrl.u32 %v895, 7
      %v897 = vsub.s32 %v894, %v896
      %v898 = vrot.slane %v884, %v897
      %v899 = vcombine.high %v880, 0.0
      %v901 = vunpack.c.l.s4 1983009808
      %v902 = vunpack.c.0.s8 %v901
      %v903 = vlaneseq
      %v904 = vshrl.u32 %v903, 7
      %v905 = vsub.s32 %v902, %v904
      %v906 = vrot.slane %v880, %v905
      %v908 = vunpack.c.l.s4 1983009808
      %v909 = vunpack.c.0.s8 %v908
      %v910 = vlaneseq
      %v911 = vshrl.u32 %v910, 7
      %v912 = vsub.s32 %v909, %v911
      %v913 = vrot.slane %v899, %v912
      %v914 = vcombine.low %v891, %v906
      %v915 = vcombine.high %v891, %v906
      %v917 = vunpack.c.l.s4 1934713408
      %v918 = vunpack.c.0.s8 %v917
      %v919 = vlaneseq
      %v920 = vshrl.u32 %v919, 7
      %v921 = vsub.s32 %v918, %v920
      %v922 = vrot.slane %v914, %v921
      %v924 = vunpack.c.l.s4 1934713408
      %v925 = vunpack.c.0.s8 %v924
      %v926 = vlaneseq
      %v927 = vshrl.u32 %v926, 7
      %v928 = vsub.s32 %v925, %v927
      %v929 = vrot.slane %v915, %v928
      %v930 = vcombine.low %v898, %v913
      %v931 = vcombine.high %v898, %v913
      %v933 = vunpack.c.l.s4 1934713408
      %v934 = vunpack.c.0.s8 %v933
      %v935 = vlaneseq
      %v936 = vshrl.u32 %v935, 7
      %v937 = vsub.s32 %v934, %v936
      %v938 = vrot.slane %v930, %v937
      %v940 = vunpack.c.l.s4 1934713408
      %v941 = vunpack.c.0.s8 %v940
      %v942 = vlaneseq
      %v943 = vshrl.u32 %v942, 7
      %v944 = vsub.s32 %v941, %v943
      %v945 = vrot.slane %v931, %v944
      %v946 = vcombine.high %v922, 0.0
      %v947 = vcombine.high %v929, 0.0
      %v948 = vcombine.high %v938, 0.0
      %v949 = vcombine.high %v945, 0.0
      %v951 = vcombine.low %v592, %v882
      %v953 = vunpack.c.l.s4 1934713408
      %v954 = vunpack.c.0.s8 %v953
      %v955 = vlaneseq
      %v956 = vshrl.u32 %v955, 7
      %v957 = vsub.s32 %v954, %v956
      %v958 = vrot.slane %v951, %v957
      %961 = vrot.lane.b32.xlu0 %v605, 122
      %v962 = vpop.permute.xlu0 %961
      %963 = vrot.lane.b32.xlu0 %v606, 122
      %v964 = vpop.permute.xlu0 %963
      %v966 = vcombine.high %v605, 0.0
      %v968 = vunpack.c.l.s4 1983009808
      %v969 = vunpack.c.0.s8 %v968
      %v970 = vlaneseq
      %v971 = vshrl.u32 %v970, 7
      %v972 = vsub.s32 %v969, %v971
      %v973 = vrot.slane %v605, %v972
      %v975 = vunpack.c.l.s4 1983009808
      %v976 = vunpack.c.0.s8 %v975
      %v977 = vlaneseq
      %v978 = vshrl.u32 %v977, 7
      %v979 = vsub.s32 %v976, %v978
      %v980 = vrot.slane %v966, %v979
      %v981 = vcombine.high %v962, 0.0
      %v983 = vunpack.c.l.s4 1983009808
      %v984 = vunpack.c.0.s8 %v983
      %v985 = vlaneseq
      %v986 = vshrl.u32 %v985, 7
      %v987 = vsub.s32 %v984, %v986
      %v988 = vrot.slane %v962, %v987
      %v990 = vunpack.c.l.s4 1983009808
      %v991 = vunpack.c.0.s8 %v990
      %v992 = vlaneseq
      %v993 = vshrl.u32 %v992, 7
      %v994 = vsub.s32 %v991, %v993
      %v995 = vrot.slane %v981, %v994
      %v996 = vcombine.low %v973, %v988
      %v997 = vcombine.high %v973, %v988
      %v999 = vunpack.c.l.s4 1934713408
      %v1000 = vunpack.c.0.s8 %v999
      %v1001 = vlaneseq
      %v1002 = vshrl.u32 %v1001, 7
      %v1003 = vsub.s32 %v1000, %v1002
      %v1004 = vrot.slane %v996, %v1003
      %v1006 = vunpack.c.l.s4 1934713408
      %v1007 = vunpack.c.0.s8 %v1006
      %v1008 = vlaneseq
      %v1009 = vshrl.u32 %v1008, 7
      %v1010 = vsub.s32 %v1007, %v1009
      %v1011 = vrot.slane %v997, %v1010
      %v1012 = vcombine.low %v980, %v995
      %v1013 = vcombine.high %v980, %v995
      %v1015 = vunpack.c.l.s4 1934713408
      %v1016 = vunpack.c.0.s8 %v1015
      %v1017 = vlaneseq
      %v1018 = vshrl.u32 %v1017, 7
      %v1019 = vsub.s32 %v1016, %v1018
      %v1020 = vrot.slane %v1012, %v1019
      %v1022 = vunpack.c.l.s4 1934713408
      %v1023 = vunpack.c.0.s8 %v1022
      %v1024 = vlaneseq
      %v1025 = vshrl.u32 %v1024, 7
      %v1026 = vsub.s32 %v1023, %v1025
      %v1027 = vrot.slane %v1013, %v1026
      %v1028 = vcombine.high %v1004, 0.0
      %v1029 = vcombine.high %v1011, 0.0
      %v1030 = vcombine.high %v1020, 0.0
      %v1031 = vcombine.high %v1027, 0.0
      %v1033 = vcombine.low %v606, %v964
      %v1035 = vunpack.c.l.s4 1934713408
      %v1036 = vunpack.c.0.s8 %v1035
      %v1037 = vlaneseq
      %v1038 = vshrl.u32 %v1037, 7
      %v1039 = vsub.s32 %v1036, %v1038
      %v1040 = vrot.slane %v1033, %v1039
      %1050 = vrot.lane.b32.xlu0 %v1004, 6
      %v1051 = vpop.permute.xlu0 %1050
      %1052 = vrot.lane.b32.xlu0 %v1028, 6
      %v1053 = vpop.permute.xlu0 %1052
      %1054 = vrot.lane.b32.xlu0 %v1011, 6
      %v1055 = vpop.permute.xlu0 %1054
      %1056 = vrot.lane.b32.xlu0 %v1029, 6
      %v1057 = vpop.permute.xlu0 %1056
      %1058 = vrot.lane.b32.xlu0 %v1020, 6
      %v1059 = vpop.permute.xlu0 %1058
      %1060 = vrot.lane.b32.xlu0 %v1030, 6
      %v1061 = vpop.permute.xlu0 %1060
      %1062 = vrot.lane.b32.xlu0 %v1027, 6
      %v1063 = vpop.permute.xlu0 %1062
      %1064 = vrot.lane.b32.xlu0 %v1031, 6
      %v1065 = vpop.permute.xlu0 %1064
      %1066 = vrot.lane.b32.xlu0 %v1040, 6
      %v1067 = vpop.permute.xlu0 %1066
      %v1077 = vsel %vm807, %v922, %v1051
      %v1078 = vsel %vm807, %v946, %v1053
      %v1079 = vsel %vm807, %v929, %v1055
      %v1080 = vsel %vm807, %v947, %v1057
      %v1081 = vsel %vm807, %v938, %v1059
      %v1082 = vsel %vm807, %v948, %v1061
      %v1083 = vsel %vm807, %v945, %v1063
      %v1084 = vsel %vm807, %v949, %v1065
      %v1085 = vcombine.low %v1077, %v1079
      %v1087 = vunpack.c.l.s4 1983009808
      %v1088 = vunpack.c.0.s8 %v1087
      %v1089 = vlaneseq
      %v1090 = vshrl.u32 %v1089, 7
      %v1091 = vsub.s32 %v1088, %v1090
      %v1092 = vrot.slane %v1085, %v1091
      %v1093 = vcombine.low %v1078, %v1080
      %v1095 = vunpack.c.l.s4 1983009808
      %v1096 = vunpack.c.0.s8 %v1095
      %v1097 = vlaneseq
      %v1098 = vshrl.u32 %v1097, 7
      %v1099 = vsub.s32 %v1096, %v1098
      %v1100 = vrot.slane %v1093, %v1099
      %v1101 = vcombine.low %v1081, %v1083
      %v1103 = vunpack.c.l.s4 1983009808
      %v1104 = vunpack.c.0.s8 %v1103
      %v1105 = vlaneseq
      %v1106 = vshrl.u32 %v1105, 7
      %v1107 = vsub.s32 %v1104, %v1106
      %v1108 = vrot.slane %v1101, %v1107
      %v1109 = vcombine.low %v1082, %v1084
      %v1111 = vunpack.c.l.s4 1983009808
      %v1112 = vunpack.c.0.s8 %v1111
      %v1113 = vlaneseq
      %v1114 = vshrl.u32 %v1113, 7
      %v1115 = vsub.s32 %v1112, %v1114
      %v1116 = vrot.slane %v1109, %v1115
      %v1117 = vcombine.low %v1092, %v1100
      %v1119 = vunpack.c.l.s4 1934713408
      %v1120 = vunpack.c.0.s8 %v1119
      %v1121 = vlaneseq
      %v1122 = vshrl.u32 %v1121, 7
      %v1123 = vsub.s32 %v1120, %v1122
      %v1124 = vrot.slane %v1117, %v1123
      %v1125 = vcombine.low %v1108, %v1116
      %v1127 = vunpack.c.l.s4 1934713408
      %v1128 = vunpack.c.0.s8 %v1127
      %v1129 = vlaneseq
      %v1130 = vshrl.u32 %v1129, 7
      %v1131 = vsub.s32 %v1128, %v1130
      %v1132 = vrot.slane %v1125, %v1131
      %v1133 = vcombine.low %v1124, %v1132
      %v1134 = vcombine.high %v1124, %v1132
      %v1135 = vsel %vm807, %v958, %v1067
      %v1137 = vunpack.c.l.s4 1934713408
      %v1138 = vunpack.c.0.s8 %v1137
      %v1139 = vlaneseq
      %v1140 = vshrl.u32 %v1139, 7
      %v1141 = vsub.s32 %v1138, %v1140
      %v1142 = vrot.slane %v1135, %v1141
      %v1143 = vcombine.high %v1142, 0.0
      %v1144 = vpack.c.bf16 %v1142, %v1133
      %v1145 = vpack.c.bf16 %v1143, %v1134
      %1148 = vrot.lane.b32.xlu0 %v521, 116
      %v1149 = vpop.permute.xlu0 %1148
      %1150 = vrot.lane.b32.xlu0 %v524, 116
      %v1151 = vpop.permute.xlu0 %1150
      %v1153 = vcombine.high %v521, 0.0
      %v1155 = vunpack.c.l.s4 1983009808
      %v1156 = vunpack.c.0.s8 %v1155
      %v1157 = vlaneseq
      %v1158 = vshrl.u32 %v1157, 7
      %v1159 = vsub.s32 %v1156, %v1158
      %v1160 = vrot.slane %v521, %v1159
      %v1162 = vunpack.c.l.s4 1983009808
      %v1163 = vunpack.c.0.s8 %v1162
      %v1164 = vlaneseq
      %v1165 = vshrl.u32 %v1164, 7
      %v1166 = vsub.s32 %v1163, %v1165
      %v1167 = vrot.slane %v1153, %v1166
      %v1168 = vcombine.high %v1149, 0.0
      %v1170 = vunpack.c.l.s4 1983009808
      %v1171 = vunpack.c.0.s8 %v1170
      %v1172 = vlaneseq
      %v1173 = vshrl.u32 %v1172, 7
      %v1174 = vsub.s32 %v1171, %v1173
      %v1175 = vrot.slane %v1149, %v1174
      %v1177 = vunpack.c.l.s4 1983009808
      %v1178 = vunpack.c.0.s8 %v1177
      %v1179 = vlaneseq
      %v1180 = vshrl.u32 %v1179, 7
      %v1181 = vsub.s32 %v1178, %v1180
      %v1182 = vrot.slane %v1168, %v1181
      %v1183 = vcombine.low %v1160, %v1175
      %v1184 = vcombine.high %v1160, %v1175
      %v1186 = vunpack.c.l.s4 1934713408
      %v1187 = vunpack.c.0.s8 %v1186
      %v1188 = vlaneseq
      %v1189 = vshrl.u32 %v1188, 7
      %v1190 = vsub.s32 %v1187, %v1189
      %v1191 = vrot.slane %v1183, %v1190
      %v1193 = vunpack.c.l.s4 1934713408
      %v1194 = vunpack.c.0.s8 %v1193
      %v1195 = vlaneseq
      %v1196 = vshrl.u32 %v1195, 7
      %v1197 = vsub.s32 %v1194, %v1196
      %v1198 = vrot.slane %v1184, %v1197
      %v1199 = vcombine.low %v1167, %v1182
      %v1200 = vcombine.high %v1167, %v1182
      %v1202 = vunpack.c.l.s4 1934713408
      %v1203 = vunpack.c.0.s8 %v1202
      %v1204 = vlaneseq
      %v1205 = vshrl.u32 %v1204, 7
      %v1206 = vsub.s32 %v1203, %v1205
      %v1207 = vrot.slane %v1199, %v1206
      %v1209 = vunpack.c.l.s4 1934713408
      %v1210 = vunpack.c.0.s8 %v1209
      %v1211 = vlaneseq
      %v1212 = vshrl.u32 %v1211, 7
      %v1213 = vsub.s32 %v1210, %v1212
      %v1214 = vrot.slane %v1200, %v1213
      %v1215 = vcombine.high %v1191, 0.0
      %v1216 = vcombine.high %v1198, 0.0
      %v1217 = vcombine.high %v1207, 0.0
      %v1218 = vcombine.high %v1214, 0.0
      %v1220 = vcombine.low %v524, %v1151
      %v1221 = vcombine.low %v1191, %v1198
      %v1223 = vunpack.c.l.s4 1983009808
      %v1224 = vunpack.c.0.s8 %v1223
      %v1225 = vlaneseq
      %v1226 = vshrl.u32 %v1225, 7
      %v1227 = vsub.s32 %v1224, %v1226
      %v1228 = vrot.slane %v1221, %v1227
      %v1229 = vcombine.low %v1215, %v1216
      %v1231 = vunpack.c.l.s4 1983009808
      %v1232 = vunpack.c.0.s8 %v1231
      %v1233 = vlaneseq
      %v1234 = vshrl.u32 %v1233, 7
      %v1235 = vsub.s32 %v1232, %v1234
      %v1236 = vrot.slane %v1229, %v1235
      %v1237 = vcombine.low %v1207, %v1214
      %v1239 = vunpack.c.l.s4 1983009808
      %v1240 = vunpack.c.0.s8 %v1239
      %v1241 = vlaneseq
      %v1242 = vshrl.u32 %v1241, 7
      %v1243 = vsub.s32 %v1240, %v1242
      %v1244 = vrot.slane %v1237, %v1243
      %v1245 = vcombine.low %v1217, %v1218
      %v1247 = vunpack.c.l.s4 1983009808
      %v1248 = vunpack.c.0.s8 %v1247
      %v1249 = vlaneseq
      %v1250 = vshrl.u32 %v1249, 7
      %v1251 = vsub.s32 %v1248, %v1250
      %v1252 = vrot.slane %v1245, %v1251
      %v1253 = vcombine.low %v1228, %v1236
      %v1255 = vunpack.c.l.s4 1934713408
      %v1256 = vunpack.c.0.s8 %v1255
      %v1257 = vlaneseq
      %v1258 = vshrl.u32 %v1257, 7
      %v1259 = vsub.s32 %v1256, %v1258
      %v1260 = vrot.slane %v1253, %v1259
      %v1261 = vcombine.low %v1244, %v1252
      %v1263 = vunpack.c.l.s4 1934713408
      %v1264 = vunpack.c.0.s8 %v1263
      %v1265 = vlaneseq
      %v1266 = vshrl.u32 %v1265, 7
      %v1267 = vsub.s32 %v1264, %v1266
      %v1268 = vrot.slane %v1261, %v1267
      %v1269 = vcombine.low %v1260, %v1268
      %v1270 = vcombine.high %v1260, %v1268
      %v1272 = vunpack.c.l.s4 1934713408
      %v1273 = vunpack.c.0.s8 %v1272
      %v1274 = vlaneseq
      %v1275 = vshrl.u32 %v1274, 7
      %v1276 = vsub.s32 %v1273, %v1275
      %v1277 = vrot.slane %v1220, %v1276
      %v1279 = vunpack.c.l.s4 1934713408
      %v1280 = vunpack.c.0.s8 %v1279
      %v1281 = vlaneseq
      %v1282 = vshrl.u32 %v1281, 7
      %v1283 = vsub.s32 %v1280, %v1282
      %v1284 = vrot.slane %v1277, %v1283
      %v1285 = vcombine.high %v1284, 0.0
      %v1286 = vpack.c.bf16 %v1284, %v1269
      %v1287 = vpack.c.bf16 %v1285, %v1270
      %vm1288 = vcmask 97280
      %v1290 = vsel %vm1288, %v875, 0
      %v1293 = vsel %vm1288, %v1144, 0
      %1295 = vmatprep.subr.bf16.mxu0 0
      %1296 = vmatpush1.bf16.xpose.msra.mxu0 %v1293
      %1297 = vmatprep.subr.bf16.mxu0 0
      %1298 = vmatpush1.bf16.xpose.msra.mxu0 0
      %1299 = vmatprep.subr.bf16.mxu0 0
      %1300 = vmatpush1.bf16.xpose.msra.mxu0 0
      %1301 = vmatprep.subr.bf16.mxu0 0
      %1302 = vmatpush1.bf16.xpose.msra.mxu0 0
      %1303 = vmatprep.subr.bf16.mxu0 0
      %1304 = vmatpush1.bf16.xpose.msra.mxu0 0
      %1305 = vmatprep.subr.bf16.mxu0 0
      %1306 = vmatpush1.bf16.xpose.msra.mxu0 0
      %1307 = vmatprep.subr.bf16.mxu0 0
      %1308 = vmatpush1.bf16.xpose.msra.mxu0 0
      %1309 = vmatprep.subr.bf16.mxu0 0
      %1310 = vmatpush1.bf16.xpose.msra.mxu0 0
      %1311 = vmatprep.subr.bf16.mxu0 0
      %1312 = vmatpush1.bf16.xpose.msra.mxu0 0
      %1313 = vmatprep.subr.bf16.mxu0 0
      %1314 = vmatpush1.bf16.xpose.msra.mxu0 0
      %1315 = vmatprep.subr.bf16.mxu0 0
      %1316 = vmatpush1.bf16.xpose.msra.mxu0 0
      %1317 = vmatprep.subr.bf16.mxu0 0
      %1318 = vmatpush1.bf16.xpose.msra.mxu0 0
      %1319 = vmatprep.subr.bf16.mxu0 0
      %1320 = vmatpush1.bf16.xpose.msra.mxu0 0
      %1321 = vmatprep.subr.bf16.mxu0 0
      %1322 = vmatpush1.bf16.xpose.msra.mxu0 0
      %1323 = vmatprep.subr.bf16.mxu0 0
      %1324 = vmatpush1.bf16.xpose.msra.mxu0 0
      %1325 = vmatprep.subr.bf16.mxu0 0
      %1326 = vmatpush1.bf16.xpose.msra.mxu0 0
      %1327 = vmatprep.mubr.bf16.mxu0 0
      %1328 = vmatmul.mubr.bf16.gmra.mrb[0].mxu0 %v1290
      %v1329 = vpop.f32.mrb[0].mxu0
      %v1330 = vadd.f32 0.0, %v1329
      %v1331 = vpop.f32.mrb[0].mxu0
      %v1332 = vpop.f32.mrb[0].mxu0
      %v1333 = vadd.f32 0.0, %v1332
      %v1334 = vpop.f32.mrb[0].mxu0
      %1335 = vdwg.mxu0
      %v1337 = vsel %vm1288, %v876, 0
      %v1340 = vsel %vm1288, %v1145, 0
      %1342 = vmatprep.subr.bf16.mxu0 0
      %1343 = vmatpush1.bf16.xpose.msra.mxu0 %v1340
      %1344 = vmatprep.subr.bf16.mxu0 0
      %1345 = vmatpush1.bf16.xpose.msra.mxu0 0
      %1346 = vmatprep.subr.bf16.mxu0 0
      %1347 = vmatpush1.bf16.xpose.msra.mxu0 0
      %1348 = vmatprep.subr.bf16.mxu0 0
      %1349 = vmatpush1.bf16.xpose.msra.mxu0 0
      %1350 = vmatprep.subr.bf16.mxu0 0
      %1351 = vmatpush1.bf16.xpose.msra.mxu0 0
      %1352 = vmatprep.subr.bf16.mxu0 0
      %1353 = vmatpush1.bf16.xpose.msra.mxu0 0
      %1354 = vmatprep.subr.bf16.mxu0 0
      %1355 = vmatpush1.bf16.xpose.msra.mxu0 0
      %1356 = vmatprep.subr.bf16.mxu0 0
      %1357 = vmatpush1.bf16.xpose.msra.mxu0 0
      %1358 = vmatprep.subr.bf16.mxu0 0
      %1359 = vmatpush1.bf16.xpose.msra.mxu0 0
      %1360 = vmatprep.subr.bf16.mxu0 0
      %1361 = vmatpush1.bf16.xpose.msra.mxu0 0
      %1362 = vmatprep.subr.bf16.mxu0 0
      %1363 = vmatpush1.bf16.xpose.msra.mxu0 0
      %1364 = vmatprep.subr.bf16.mxu0 0
      %1365 = vmatpush1.bf16.xpose.msra.mxu0 0
      %1366 = vmatprep.subr.bf16.mxu0 0
      %1367 = vmatpush1.bf16.xpose.msra.mxu0 0
      %1368 = vmatprep.subr.bf16.mxu0 0
      %1369 = vmatpush1.bf16.xpose.msra.mxu0 0
      %1370 = vmatprep.subr.bf16.mxu0 0
      %1371 = vmatpush1.bf16.xpose.msra.mxu0 0
      %1372 = vmatprep.subr.bf16.mxu0 0
      %1373 = vmatpush1.bf16.xpose.msra.mxu0 0
      %1374 = vmatprep.mubr.bf16.mxu0 0
      %1375 = vmatmul.mubr.bf16.gmra.mrb[0].mxu0 %v1337
      %v1376 = vpop.f32.mrb[0].mxu0
      %v1377 = vadd.f32 0.0, %v1376
      %v1378 = vpop.f32.mrb[0].mxu0
      %v1379 = vpop.f32.mrb[0].mxu0
      %v1380 = vadd.f32 0.0, %v1379
      %v1381 = vpop.f32.mrb[0].mxu0
      %1382 = vdwg.mxu0
      %v1383 = vmul.f32 %v1330, 0.28867513
      %v1384 = vmul.f32 %v1333, 0.28867513
      %v1385 = vmul.f32 %v1377, 0.28867513
      %v1386 = vmul.f32 %v1380, 0.28867513
      %vm1387 = vcmask 72704
      %v1388 = vsel %vm1387, %v1383, -inf
      %1389 = vmax.xlane.f32.xlu0 %v1388
      %v1390 = vpop.xlane.xlu0 %1389
      %vm1391 = vcmask 65536
      %v1392 = vsel %vm1391, %v1384, -inf
      %1393 = vmax.xlane.f32.xlu0 %v1392
      %v1394 = vpop.xlane.xlu0 %1393
      %v1395 = vsel %vm1387, %v1385, -inf
      %1396 = vmax.xlane.f32.xlu0 %v1395
      %v1397 = vpop.xlane.xlu0 %1396
      %v1398 = vsel %vm1391, %v1386, -inf
      %1399 = vmax.xlane.f32.xlu0 %v1398
      %v1400 = vpop.xlane.xlu0 %1399
      %v1401 = vsub.f32 %v1383, %v1390
      %v1402 = vsub.f32 %v1384, %v1394
      %v1403 = vsub.f32 %v1385, %v1397
      %v1404 = vsub.f32 %v1386, %v1400
      %v1405 = vmul.f32 %v1401, 1.442695
      %v1406 = vpow.pop %v1405
      %v1407 = vmul.f32 %v1402, 1.442695
      %v1408 = vpow.pop %v1407
      %v1409 = vmul.f32 %v1403, 1.442695
      %v1410 = vpow.pop %v1409
      %v1411 = vmul.f32 %v1404, 1.442695
      %v1412 = vpow.pop %v1411
      %v1413 = vsel %vm1387, %v1406, 0.0
      %1414 = vadd.xlane.f32.xlu0 %v1413
      %v1415 = vpop.xlane.xlu0 %1414
      %v1416 = vsel %vm1391, %v1408, 0.0
      %1417 = vadd.xlane.f32.xlu0 %v1416
      %v1418 = vpop.xlane.xlu0 %1417
      %v1419 = vsel %vm1387, %v1410, 0.0
      %1420 = vadd.xlane.f32.xlu0 %v1419
      %v1421 = vpop.xlane.xlu0 %1420
      %v1422 = vsel %vm1391, %v1412, 0.0
      %1423 = vadd.xlane.f32.xlu0 %v1422
      %v1424 = vpop.xlane.xlu0 %1423
      %v1425 = vpack.c.bf16 %v1408, %v1406
      %v1426 = vpack.c.bf16 %v1412, %v1410
      %v1428 = vsel %vm1387, %v1425, 0
      %vm1430 = vcmask 1044480
      %v1431 = vsel %vm370, 4294967295, 65535
      %v1432 = vsel %vm1430, %v1431, 0
      %v1434 = vand.u32 %v1286, %v1432
      %1436 = vmatprep.subr.bf16.mxu0 0
      %1437 = vmatpush1.bf16.msra.mxu0 %v1434
      %1438 = vmatprep.subr.bf16.mxu0 0
      %1439 = vmatpush1.bf16.msra.mxu0 0
      %1440 = vmatprep.subr.bf16.mxu0 0
      %1441 = vmatpush1.bf16.msra.mxu0 0
      %1442 = vmatprep.subr.bf16.mxu0 0
      %1443 = vmatpush1.bf16.msra.mxu0 0
      %1444 = vmatprep.subr.bf16.mxu0 0
      %1445 = vmatpush1.bf16.msra.mxu0 0
      %1446 = vmatprep.subr.bf16.mxu0 0
      %1447 = vmatpush1.bf16.msra.mxu0 0
      %1448 = vmatprep.subr.bf16.mxu0 0
      %1449 = vmatpush1.bf16.msra.mxu0 0
      %1450 = vmatprep.subr.bf16.mxu0 0
      %1451 = vmatpush1.bf16.msra.mxu0 0
      %1452 = vmatprep.subr.bf16.mxu0 0
      %1453 = vmatpush1.bf16.msra.mxu0 0
      %1454 = vmatprep.subr.bf16.mxu0 0
      %1455 = vmatpush1.bf16.msra.mxu0 0
      %1456 = vmatprep.subr.bf16.mxu0 0
      %1457 = vmatpush1.bf16.msra.mxu0 0
      %1458 = vmatprep.subr.bf16.mxu0 0
      %1459 = vmatpush1.bf16.msra.mxu0 0
      %1460 = vmatprep.subr.bf16.mxu0 0
      %1461 = vmatpush1.bf16.msra.mxu0 0
      %1462 = vmatprep.subr.bf16.mxu0 0
      %1463 = vmatpush1.bf16.msra.mxu0 0
      %1464 = vmatprep.subr.bf16.mxu0 0
      %1465 = vmatpush1.bf16.msra.mxu0 0
      %1466 = vmatprep.subr.bf16.mxu0 0
      %1467 = vmatpush1.bf16.msra.mxu0 0
      %1468 = vmatprep.mubr.bf16.mxu0 0
      %1469 = vmatmul.mubr.bf16.gmra.mrb[0].mxu0 %v1428
      %v1470 = vpop.f32.mrb[0].mxu0
      %v1471 = vadd.f32 0.0, %v1470
      %v1472 = vpop.f32.mrb[0].mxu0
      %v1473 = vpop.f32.mrb[0].mxu0
      %v1474 = vadd.f32 0.0, %v1473
      %v1475 = vpop.f32.mrb[0].mxu0
      %1476 = vdwg.mxu0
      %v1478 = vsel %vm1387, %v1426, 0
      %v1481 = vand.u32 %v1287, %v1432
      %1483 = vmatprep.subr.bf16.mxu0 0
      %1484 = vmatpush1.bf16.msra.mxu0 %v1481
      %1485 = vmatprep.subr.bf16.mxu0 0
      %1486 = vmatpush1.bf16.msra.mxu0 0
      %1487 = vmatprep.subr.bf16.mxu0 0
      %1488 = vmatpush1.bf16.msra.mxu0 0
      %1489 = vmatprep.subr.bf16.mxu0 0
      %1490 = vmatpush1.bf16.msra.mxu0 0
      %1491 = vmatprep.subr.bf16.mxu0 0
      %1492 = vmatpush1.bf16.msra.mxu0 0
      %1493 = vmatprep.subr.bf16.mxu0 0
      %1494 = vmatpush1.bf16.msra.mxu0 0
      %1495 = vmatprep.subr.bf16.mxu0 0
      %1496 = vmatpush1.bf16.msra.mxu0 0
      %1497 = vmatprep.subr.bf16.mxu0 0
      %1498 = vmatpush1.bf16.msra.mxu0 0
      %1499 = vmatprep.subr.bf16.mxu0 0
      %1500 = vmatpush1.bf16.msra.mxu0 0
      %1501 = vmatprep.subr.bf16.mxu0 0
      %1502 = vmatpush1.bf16.msra.mxu0 0
      %1503 = vmatprep.subr.bf16.mxu0 0
      %1504 = vmatpush1.bf16.msra.mxu0 0
      %1505 = vmatprep.subr.bf16.mxu0 0
      %1506 = vmatpush1.bf16.msra.mxu0 0
      %1507 = vmatprep.subr.bf16.mxu0 0
      %1508 = vmatpush1.bf16.msra.mxu0 0
      %1509 = vmatprep.subr.bf16.mxu0 0
      %1510 = vmatpush1.bf16.msra.mxu0 0
      %1511 = vmatprep.subr.bf16.mxu0 0
      %1512 = vmatpush1.bf16.msra.mxu0 0
      %1513 = vmatprep.subr.bf16.mxu0 0
      %1514 = vmatpush1.bf16.msra.mxu0 0
      %1515 = vmatprep.mubr.bf16.mxu0 0
      %1516 = vmatmul.mubr.bf16.gmra.mrb[0].mxu0 %v1478
      %v1517 = vpop.f32.mrb[0].mxu0
      %v1518 = vadd.f32 0.0, %v1517
      %v1519 = vpop.f32.mrb[0].mxu0
      %v1520 = vpop.f32.mrb[0].mxu0
      %v1521 = vadd.f32 0.0, %v1520
      %v1522 = vpop.f32.mrb[0].mxu0
      %1523 = vdwg.mxu0
      %v1524 = vrcp.pop %v1415
      %v1525 = vrcp.pop %v1418
      %v1526 = vrcp.pop %v1421
      %v1527 = vrcp.pop %v1424
      %v1528 = vmul.f32 %v1471, %v1524
      %v1529 = vmul.f32 %v1518, %v1526
      %v1530 = vcombine.high %v1528, 0.0
      %v1532 = vunpack.c.l.s4 1983009808
      %v1533 = vunpack.c.0.s8 %v1532
      %v1534 = vlaneseq
      %v1535 = vshrl.u32 %v1534, 7
      %v1536 = vsub.s32 %v1533, %v1535
      %v1537 = vrot.slane %v1528, %v1536
      %v1539 = vunpack.c.l.s4 1983009808
      %v1540 = vunpack.c.0.s8 %v1539
      %v1541 = vlaneseq
      %v1542 = vshrl.u32 %v1541, 7
      %v1543 = vsub.s32 %v1540, %v1542
      %v1544 = vrot.slane %v1530, %v1543
      %v1545 = vcombine.high %v1529, 0.0
      %v1547 = vunpack.c.l.s4 1983009808
      %v1548 = vunpack.c.0.s8 %v1547
      %v1549 = vlaneseq
      %v1550 = vshrl.u32 %v1549, 7
      %v1551 = vsub.s32 %v1548, %v1550
      %v1552 = vrot.slane %v1529, %v1551
      %v1554 = vunpack.c.l.s4 1983009808
      %v1555 = vunpack.c.0.s8 %v1554
      %v1556 = vlaneseq
      %v1557 = vshrl.u32 %v1556, 7
      %v1558 = vsub.s32 %v1555, %v1557
      %v1559 = vrot.slane %v1545, %v1558
      %v1560 = vcombine.low %v1537, %v1552
      %v1561 = vcombine.high %v1537, %v1552
      %v1563 = vunpack.c.l.s4 1934713408
      %v1564 = vunpack.c.0.s8 %v1563
      %v1565 = vlaneseq
      %v1566 = vshrl.u32 %v1565, 7
      %v1567 = vsub.s32 %v1564, %v1566
      %v1568 = vrot.slane %v1560, %v1567
      %v1570 = vunpack.c.l.s4 1934713408
      %v1571 = vunpack.c.0.s8 %v1570
      %v1572 = vlaneseq
      %v1573 = vshrl.u32 %v1572, 7
      %v1574 = vsub.s32 %v1571, %v1573
      %v1575 = vrot.slane %v1561, %v1574
      %v1576 = vcombine.low %v1544, %v1559
      %v1577 = vcombine.high %v1544, %v1559
      %v1579 = vunpack.c.l.s4 1934713408
      %v1580 = vunpack.c.0.s8 %v1579
      %v1581 = vlaneseq
      %v1582 = vshrl.u32 %v1581, 7
      %v1583 = vsub.s32 %v1580, %v1582
      %v1584 = vrot.slane %v1576, %v1583
      %v1586 = vunpack.c.l.s4 1934713408
      %v1587 = vunpack.c.0.s8 %v1586
      %v1588 = vlaneseq
      %v1589 = vshrl.u32 %v1588, 7
      %v1590 = vsub.s32 %v1587, %v1589
      %v1591 = vrot.slane %v1577, %v1590
      %v1592 = vcombine.high %v1568, 0.0
      %v1593 = vcombine.high %v1575, 0.0
      %v1594 = vcombine.high %v1584, 0.0
      %v1595 = vcombine.high %v1591, 0.0
      %v1596 = vmul.f32 %v1474, %v1525
      %v1597 = vmul.f32 %v1521, %v1527
      %v1598 = vcombine.low %v1596, %v1597
      %v1599 = vcombine.low %v1568, %v1575
      %v1601 = vunpack.c.l.s4 1983009808
      %v1602 = vunpack.c.0.s8 %v1601
      %v1603 = vlaneseq
      %v1604 = vshrl.u32 %v1603, 7
      %v1605 = vsub.s32 %v1602, %v1604
      %v1606 = vrot.slane %v1599, %v1605
      %v1607 = vcombine.low %v1592, %v1593
      %v1609 = vunpack.c.l.s4 1983009808
      %v1610 = vunpack.c.0.s8 %v1609
      %v1611 = vlaneseq
      %v1612 = vshrl.u32 %v1611, 7
      %v1613 = vsub.s32 %v1610, %v1612
      %v1614 = vrot.slane %v1607, %v1613
      %v1615 = vcombine.low %v1584, %v1591
      %v1617 = vunpack.c.l.s4 1983009808
      %v1618 = vunpack.c.0.s8 %v1617
      %v1619 = vlaneseq
      %v1620 = vshrl.u32 %v1619, 7
      %v1621 = vsub.s32 %v1618, %v1620
      %v1622 = vrot.slane %v1615, %v1621
      %v1623 = vcombine.low %v1594, %v1595
      %v1625 = vunpack.c.l.s4 1983009808
      %v1626 = vunpack.c.0.s8 %v1625
      %v1627 = vlaneseq
      %v1628 = vshrl.u32 %v1627, 7
      %v1629 = vsub.s32 %v1626, %v1628
      %v1630 = vrot.slane %v1623, %v1629
      %v1631 = vcombine.low %v1606, %v1614
      %v1633 = vunpack.c.l.s4 1934713408
      %v1634 = vunpack.c.0.s8 %v1633
      %v1635 = vlaneseq
      %v1636 = vshrl.u32 %v1635, 7
      %v1637 = vsub.s32 %v1634, %v1636
      %v1638 = vrot.slane %v1631, %v1637
      %v1639 = vcombine.low %v1622, %v1630
      %v1641 = vunpack.c.l.s4 1934713408
      %v1642 = vunpack.c.0.s8 %v1641
      %v1643 = vlaneseq
      %v1644 = vshrl.u32 %v1643, 7
      %v1645 = vsub.s32 %v1642, %v1644
      %v1646 = vrot.slane %v1639, %v1645
      %v1647 = vcombine.low %v1638, %v1646
      %v1648 = vcombine.high %v1638, %v1646
      %v1650 = vunpack.c.l.s4 1934713408
      %v1651 = vunpack.c.0.s8 %v1650
      %v1652 = vlaneseq
      %v1653 = vshrl.u32 %v1652, 7
      %v1654 = vsub.s32 %v1651, %v1653
      %v1655 = vrot.slane %v1598, %v1654
      %v1657 = vunpack.c.l.s4 1934713408
      %v1658 = vunpack.c.0.s8 %v1657
      %v1659 = vlaneseq
      %v1660 = vshrl.u32 %v1659, 7
      %v1661 = vsub.s32 %v1658, %v1660
      %v1662 = vrot.slane %v1655, %v1661
      %v1663 = vcombine.high %v1662, 0.0
      %1666 = vrot.lane.b32.xlu0 %v1648, 12
      %v1667 = vpop.permute.xlu0 %1666
      %1668 = vrot.lane.b32.xlu0 %v1663, 12
      %v1669 = vpop.permute.xlu0 %1668
      %v1672 = vsel %vm1288, %v1647, %v1667
      %v1673 = vsel %vm1288, %v1662, %v1669
      %v1674 = vpack.c.bf16 %v1673, %v1672
      %v1675 = vld [vmem:[%s6] sm:$0xf]
      %v1676 = vld [vmem:[%s6 + $0x4] sm:$0xf]
      %v1677 = vld [vmem:[%s6 + $0x8] sm:$0xf]
      %v1678 = vld [vmem:[%s7] sm:$0x1]
      %v1680 = vlaneseq
      %v1681 = vshrl.u32 %v1680, 7
      %v1682 = vsub.s32 0, %v1681
      %v1683 = vrot.slane %v1678, %v1682
      %v1688 = vunpack.c.l.b16 %v1675
      %v1689 = vunpack.c.l.b16 %v1676
      %v1690 = vunpack.c.l.b16 %v1677
      %v1691 = vpack.c.b16 %v1689, %v1688
      %v1692 = vpack.c.b16 %v1690, %v1690
      %v1695 = vsel %vm366, %v1674, 0
      %v1698 = vsel %vm370, %v1692, 0
      %1700 = vmatprep.subr.bf16.mxu0 0
      %1701 = vmatpush1.bf16.msra.mxu0 %v1691
      %1702 = vmatprep.subr.bf16.mxu0 0
      %1703 = vmatpush1.bf16.msra.mxu0 %v1698
      %1704 = vmatprep.subr.bf16.mxu0 0
      %1705 = vmatpush1.bf16.msra.mxu0 0
      %1706 = vmatprep.subr.bf16.mxu0 0
      %1707 = vmatpush1.bf16.msra.mxu0 0
      %1708 = vmatprep.subr.bf16.mxu0 0
      %1709 = vmatpush1.bf16.msra.mxu0 0
      %1710 = vmatprep.subr.bf16.mxu0 0
      %1711 = vmatpush1.bf16.msra.mxu0 0
      %1712 = vmatprep.subr.bf16.mxu0 0
      %1713 = vmatpush1.bf16.msra.mxu0 0
      %1714 = vmatprep.subr.bf16.mxu0 0
      %1715 = vmatpush1.bf16.msra.mxu0 0
      %1716 = vmatprep.subr.bf16.mxu0 0
      %1717 = vmatpush1.bf16.msra.mxu0 0
      %1718 = vmatprep.subr.bf16.mxu0 0
      %1719 = vmatpush1.bf16.msra.mxu0 0
      %1720 = vmatprep.subr.bf16.mxu0 0
      %1721 = vmatpush1.bf16.msra.mxu0 0
      %1722 = vmatprep.subr.bf16.mxu0 0
      %1723 = vmatpush1.bf16.msra.mxu0 0
      %1724 = vmatprep.subr.bf16.mxu0 0
      %1725 = vmatpush1.bf16.msra.mxu0 0
      %1726 = vmatprep.subr.bf16.mxu0 0
      %1727 = vmatpush1.bf16.msra.mxu0 0
      %1728 = vmatprep.subr.bf16.mxu0 0
      %1729 = vmatpush1.bf16.msra.mxu0 0
      %1730 = vmatprep.subr.bf16.mxu0 0
      %1731 = vmatpush1.bf16.msra.mxu0 0
      %1732 = vmatprep.mubr.bf16.mxu0 0
      %1733 = vmatmul.mubr.bf16.gmra.mrb[0].mxu0 %v1695
      %v1734 = vpop.f32.mrb[0].mxu0
      %v1735 = vadd.f32 %v1683, %v1734
      %v1736 = vpop.f32.mrb[0].mxu0
      %v1737 = vpop.f32.mrb[0].mxu0
      %v1738 = vadd.f32 %v1683, %v1737
      %v1739 = vpop.f32.mrb[0].mxu0
      %1740 = vdwg.mxu0
      %1741 = vst.msk [vmem:[%s345] sm:$0xff] %vm366, %v1735
      %vm1742 = vcmask 188416
      %1743 = vst.msk [vmem:[%s345 + $0x8] sm:$0x1] %vm1742, %v1738
      %p1744 = scmp.lt.s32.totalorder %s19, 1
      %s1745 = scalar_select %p1744, %s19, 1
      %s1746 = smul.addr %s1745, 2
      %s1747 = smul.addr %s1746, 8
      %s1748 = scalar_lea.vmem %s8, %s1747
      // Predicated region
      $region53: #{tpu_custom_call.1} parent=51 // pred_check
        %p1749 = pneg %p220
      $region54: #{tpu_custom_call.1} parent=51 // pred_check_branch
        %1751 = sbr.rel (%p1749) target = $region56
      $region55: #{tpu_custom_call.1} parent=51 // pred_region
        _
      $region56: #{tpu_custom_call.1} parent=51 // pred_fallthru
        _
    $region52: #{tpu_custom_call.1} parent=5 // pred_fallthru
      _
    %p1752 = scmp.le.s32.totalorder 2, %s14
    // Predicated region
    $region57: #{tpu_custom_call.1} parent=5 // pred_check
      %p1753 = pneg %p1752
    $region58: #{tpu_custom_call.1} parent=5 // pred_check_branch
      %1755 = sbr.rel (%p1753) target = $region60
    $region59: #{tpu_custom_call.1} parent=5 // pred_region
      %s1756 = ssub.s32 %s14, 2
      // Predicated region
      $region61: #{tpu_custom_call.1} parent=59 // pred_check
        %p1757 = pneg %p226
      $region62: #{tpu_custom_call.1} parent=59 // pred_check_branch
        %1759 = sbr.rel (%p1757) target = $region64
      $region63: #{tpu_custom_call.1} parent=59 // pred_region
        %p1760 = scmp.lt.s32.totalorder %s20, 1
        %s1761 = scalar_select %p1760, %s20, 1
        %s1762 = smul.addr %s1761, 2
        %s1763 = smul.addr %s1762, 8
        %s1764 = scalar_lea.vmem %s8, %s1763
      $region64: #{tpu_custom_call.1} parent=59 // pred_fallthru
        _
    $region60: #{tpu_custom_call.1} parent=5 // pred_fallthru
      _
  $region6: #{tpu_custom_call.1} parent=0 // loop_footer
    %s18 = sadd.s32 1, %s14
  $region7: #{tpu_custom_call.1} parent=0 // loop_footer_branch
    %13 = sbr.rel target = $region3
  $region8: #{tpu_custom_call.1} parent=0 // loop_exit
    _

</llo_original>
